<compile_context>
chip_gen: v7x
topology: tpu7x:2x2x1
jax: 0.10.0
libtpu: 0.0.40
codegen_flags: <defaults>
</compile_context>

<pallas_src>
import math
from functools import partial

import jax
import jax.numpy as jnp
from jax import lax
from jax.experimental import pallas as pl
from jax.experimental.pallas import tpu as pltpu


# ----------------------------- kernel helpers -----------------------------

def _layernorm(x, w, b, eps=1e-5):
    # PyTorch nn.LayerNorm: biased variance, eps inside sqrt.  Kept in f32.
    mu = jnp.mean(x, axis=-1, keepdims=True)
    var = jnp.mean((x - mu) ** 2, axis=-1, keepdims=True)
    return (x - mu) * lax.rsqrt(var + eps) * w + b


def _gelu_exact(x):
    # nn.GELU default is the exact (erf) formulation.  f32 (v5e has no bf16 EUP).
    return 0.5 * x * (1.0 + lax.erf(x * (1.0 / math.sqrt(2.0))))


# -------------------------------- kernel ----------------------------------

def _block_kernel(xq_ref, xf_ref, ln1w_ref, ln1b_ref, wq_ref, wk_ref, wv_ref,
                  wproj_ref, bproj_ref, ln2w_ref, ln2b_ref, w1_ref, b1_ref,
                  w2_ref, b2_ref, o_ref, k_sc, v_sc,
                  *, num_heads, head_dim, scale):
    bf16 = jnp.bfloat16
    qi = pl.program_id(1)

    # ---- K / V for the whole sequence: computed once per batch element ----
    @pl.when(qi == 0)
    def _():
        xn_full = _layernorm(xf_ref[0], ln1w_ref[...], ln1b_ref[...]).astype(bf16)
        k_sc[...] = jnp.dot(xn_full, wk_ref[...],
                            preferred_element_type=jnp.float32).astype(bf16)
        v_sc[...] = jnp.dot(xn_full, wv_ref[...],
                            preferred_element_type=jnp.float32).astype(bf16)

    # ---- attention branch for this q-tile ----
    xq = xq_ref[0]                                             # (TQ, D) f32
    xn_q = _layernorm(xq, ln1w_ref[...], ln1b_ref[...])
    # fold the softmax scale into q (TQ*D elements instead of TQ*N scores)
    q = jnp.dot(xn_q.astype(bf16), wq_ref[...],
                preferred_element_type=jnp.float32) * scale
    q = q.astype(bf16)                                         # (TQ, D)
    k = k_sc[...]                                              # (N, D) bf16
    v = v_sc[...]                                              # (N, D) bf16

    # contract head_dim of q against head_dim of k directly (no k.T / XLU)
    dn = (((1,), (1,)), ((), ()))
    attn = jnp.zeros(xq.shape, jnp.float32)
    for h in range(num_heads):                                 # static unroll
        sl = slice(h * head_dim, (h + 1) * head_dim)
        s = lax.dot_general(q[:, sl], k[:, sl], dimension_numbers=dn,
                            preferred_element_type=jnp.float32)   # (TQ, N)
        s = s - jnp.max(s, axis=-1, keepdims=True)
        p = jnp.exp(s)
        p = p * pl.reciprocal(jnp.sum(p, axis=-1, keepdims=True), approx=True)
        ho = jnp.dot(p.astype(bf16), v[:, sl],
                     preferred_element_type=jnp.float32)           # (TQ, hd)
        # fold the output projection per head (sublane-aligned row slice of
        # W_proj) and accumulate in f32 -> no concat of head outputs.
        attn = attn + jnp.dot(ho.astype(bf16), wproj_ref[sl, :],
                              preferred_element_type=jnp.float32)
    x1 = xq + attn + bproj_ref[...]                            # residual, f32

    # ---- MLP branch: x + fc2(gelu(fc1(LN2(x)))) ----
    xn2 = _layernorm(x1, ln2w_ref[...], ln2b_ref[...])
    h1 = jnp.dot(xn2.astype(bf16), w1_ref[...],
                 preferred_element_type=jnp.float32) + b1_ref[...]
    h1 = _gelu_exact(h1)
    h2 = jnp.dot(h1.astype(bf16), w2_ref[...],
                 preferred_element_type=jnp.float32) + b2_ref[...]

    o_ref[0] = (x1 + h2).astype(o_ref.dtype)


# ------------------------------- wrapper -----------------------------------

def _pick_block_q(n, max_tile=128):
    """Largest multiple-of-8 divisor of n that is <= max_tile, else full n."""
    if n <= max_tile:
        return n
    for t in range(max_tile, 0, -8):
        if n % t == 0:
            return t
    return n


def vit_block_forward(x, params, *, num_heads, block_q=None):
    B, N, D = x.shape
    head_dim = D // num_heads
    scale = head_dim ** -0.5
    hidden = params["w1"].shape[1]

    TQ = block_q if block_q is not None else _pick_block_q(N)
    if N % TQ != 0:
        TQ = N
    n_q = N // TQ

    kern = partial(_block_kernel, num_heads=num_heads, head_dim=head_dim,
                   scale=scale)

    def const(shape):
        return pl.BlockSpec(shape, lambda b, qi: (0, 0))

    # advisory cost estimate so XLA can overlap neighbouring ops
    flops = 2 * B * N * D * (3 * D + 2 * N + D + 2 * hidden)
    transcendentals = B * num_heads * N * N + B * N * hidden
    bytes_accessed = (3 * B * N * D) * 4 \
        + (4 * D * D + 2 * D * hidden) * 2 \
        + (3 * D + hidden) * 4

    return pl.pallas_call(
        kern,
        out_shape=jax.ShapeDtypeStruct((B, N, D), x.dtype),
        grid=(B, n_q),
        in_specs=[
            pl.BlockSpec((1, TQ, D), lambda b, qi: (b, qi, 0)),  # x, q-tile
            pl.BlockSpec((1, N, D), lambda b, qi: (b, 0, 0)),    # x, full seq (K/V)
            const((1, D)), const((1, D)),                        # ln1 w, b
            const((D, D)), const((D, D)), const((D, D)),         # wq, wk, wv (bf16)
            const((D, D)), const((1, D)),                        # proj weight, bias
            const((1, D)), const((1, D)),                        # ln2 w, b
            const((D, hidden)), const((1, hidden)),              # fc1 weight, bias
            const((hidden, D)), const((1, D)),                   # fc2 weight, bias
        ],
        out_specs=pl.BlockSpec((1, TQ, D), lambda b, qi: (b, qi, 0)),
        scratch_shapes=[
            pltpu.VMEM((N, D), jnp.bfloat16),   # K cache (per batch element)
            pltpu.VMEM((N, D), jnp.bfloat16),   # V cache (per batch element)
        ],
        compiler_params=pltpu.CompilerParams(
            dimension_semantics=("parallel", "arbitrary"),
            vmem_limit_bytes=64 * 1024 * 1024,
        ),
        cost_estimate=pl.CostEstimate(
            flops=flops, transcendentals=transcendentals,
            bytes_accessed=bytes_accessed),
    )(x, x, params["ln1_w"], params["ln1_b"], params["wq"], params["wk"],
      params["wv"], params["wproj"], params["bproj"], params["ln2_w"],
      params["ln2_b"], params["w1"], params["b1"], params["w2"], params["b2"])


def init_params(key, dim, mlp_ratio=4.0):
    """Matches _init_weights: xavier_uniform linear weights, zero biases,
    LayerNorm weight=1 / bias=0.  Linear weights are stored transposed
    (in, out) and in bf16 (MXU operands); biases / LN params stay f32."""
    hidden = int(dim * mlp_ratio)
    ks = jax.random.split(key, 4)
    bf16 = jnp.bfloat16

    def xavier(k, fan_in, fan_out):
        bound = math.sqrt(6.0 / (fan_in + fan_out))
        return jax.random.uniform(k, (fan_in, fan_out), jnp.float32, -bound, bound)

    wqkv = xavier(ks[0], dim, 3 * dim)          # one qkv Linear, then split
    return dict(
        ln1_w=jnp.ones((1, dim), jnp.float32),
        ln1_b=jnp.zeros((1, dim), jnp.float32),
        wq=wqkv[:, :dim].astype(bf16),
        wk=wqkv[:, dim:2 * dim].astype(bf16),
        wv=wqkv[:, 2 * dim:].astype(bf16),
        wproj=xavier(ks[1], dim, dim).astype(bf16),
        bproj=jnp.zeros((1, dim), jnp.float32),
        ln2_w=jnp.ones((1, dim), jnp.float32),
        ln2_b=jnp.zeros((1, dim), jnp.float32),
        w1=xavier(ks[2], dim, hidden).astype(bf16),
        b1=jnp.zeros((1, hidden), jnp.float32),
        w2=xavier(ks[3], hidden, dim).astype(bf16),
        b2=jnp.zeros((1, dim), jnp.float32),
    )


# ---------------------- pure-JAX reference (same casts) ---------------------

def _reference(x, params, num_heads):
    B, N, D = x.shape
    hd = D // num_heads
    scale = hd ** -0.5
    bf16 = jnp.bfloat16

    def ln(t, w, b):
        mu = t.mean(-1, keepdims=True)
        var = ((t - mu) ** 2).mean(-1, keepdims=True)
        return (t - mu) * lax.rsqrt(var + 1e-5) * w + b

    xn = ln(x, params["ln1_w"], params["ln1_b"]).astype(bf16)
    q = jnp.einsum("bnd,de->bne", xn, params["wq"],
                   preferred_element_type=jnp.float32) * scale
    k = jnp.einsum("bnd,de->bne", xn, params["wk"],
                   preferred_element_type=jnp.float32).astype(bf16)
    v = jnp.einsum("bnd,de->bne", xn, params["wv"],
                   preferred_element_type=jnp.float32).astype(bf16)
    q = q.astype(bf16)
    qh = q.reshape(B, N, num_heads, hd).transpose(0, 2, 1, 3)
    kh = k.reshape(B, N, num_heads, hd).transpose(0, 2, 1, 3)
    vh = v.reshape(B, N, num_heads, hd).transpose(0, 2, 1, 3)
    s = jnp.einsum("bhqd,bhkd->bhqk", qh, kh, preferred_element_type=jnp.float32)
    s = s - s.max(-1, keepdims=True)
    p = jnp.exp(s)
    p = p / p.sum(-1, keepdims=True)
    ho = jnp.einsum("bhqk,bhkd->bhqd", p.astype(bf16), vh,
                    preferred_element_type=jnp.float32)
    ho = ho.transpose(0, 2, 1, 3).reshape(B, N, D).astype(bf16)
    attn = jnp.einsum("bnd,de->bne", ho, params["wproj"],
                      preferred_element_type=jnp.float32) + params["bproj"]
    x1 = x + attn
    xn2 = ln(x1, params["ln2_w"], params["ln2_b"]).astype(bf16)
    h1 = jnp.einsum("bnd,dh->bnh", xn2, params["w1"],
                    preferred_element_type=jnp.float32) + params["b1"]
    h1 = 0.5 * h1 * (1.0 + lax.erf(h1 * (1.0 / math.sqrt(2.0))))
    h2 = jnp.einsum("bnh,hd->bnd", h1.astype(bf16), params["w2"],
                    preferred_element_type=jnp.float32) + params["b2"]
    return x1 + h2


if __name__ == "__main__":
    B, N, D, H = 2, 8, 32, 4            # batch, tokens, dim, heads (head_dim=8)
    key = jax.random.PRNGKey(0)
    k_x, k_p, k_m, k_img = jax.random.split(key, 4)

    x_inp = jax.random.normal(k_x, (B, N, D), jnp.float32)
    mask = (jax.random.uniform(k_m, (B, N)) > 0.5).astype(jnp.float32)
    ids_restore = jnp.tile(jnp.arange(N, dtype=jnp.int32)[None, :], (B, 1))
    imgs = jax.random.normal(k_img, (B, 3, 16, 16), jnp.float32)

    params = init_params(k_p, D, mlp_ratio=4.0)

    y = vit_block_forward(x_inp, params, num_heads=H)
    # module returns the tuple with untouched mask / ids_restore / imgs
    out = (y, mask, ids_restore, imgs)
    jax.block_until_ready(out[0])
    assert out[0].shape == (B, N, D)

    # correctness check against a pure-JAX reference with matching precision
    y_ref = _reference(x_inp, params, H)
    err = float(jnp.max(jnp.abs(out[0] - y_ref)))
    assert err < 2e-2, f"max abs err {err}"
    print("KERNEL_OK")
</pallas_src>

<mosaic_0001>
module attributes {stable_mosaic.version = 11 : i64} {
  func.func @_block_kernel(%arg0: i32, %arg1: i32, %arg2: memref<1x8x32xf32, #tpu.memory_space<vmem>>, %arg3: memref<1x8x32xf32, #tpu.memory_space<vmem>>, %arg4: memref<1x32xf32, #tpu.memory_space<vmem>>, %arg5: memref<1x32xf32, #tpu.memory_space<vmem>>, %arg6: memref<32x32xbf16, #tpu.memory_space<vmem>>, %arg7: memref<32x32xbf16, #tpu.memory_space<vmem>>, %arg8: memref<32x32xbf16, #tpu.memory_space<vmem>>, %arg9: memref<32x32xbf16, #tpu.memory_space<vmem>>, %arg10: memref<1x32xf32, #tpu.memory_space<vmem>>, %arg11: memref<1x32xf32, #tpu.memory_space<vmem>>, %arg12: memref<1x32xf32, #tpu.memory_space<vmem>>, %arg13: memref<32x128xbf16, #tpu.memory_space<vmem>>, %arg14: memref<1x128xf32, #tpu.memory_space<vmem>>, %arg15: memref<128x32xbf16, #tpu.memory_space<vmem>>, %arg16: memref<1x32xf32, #tpu.memory_space<vmem>>, %arg17: memref<1x8x32xf32, #tpu.memory_space<vmem>>, %arg18: memref<8x32xbf16, #tpu.memory_space<vmem>>, %arg19: memref<8x32xbf16, #tpu.memory_space<vmem>>) attributes {dimension_semantics = [#tpu.dimension_semantics<parallel>, #tpu.dimension_semantics<arbitrary>], iteration_bounds = array<i64: 2, 1>, scalar_prefetch = 0 : i64, scratch_operands = 2 : i64, tpu.core_type = #tpu.core_type<tc>, window_params = [{transform_indices = @transform_0, window_bounds = array<i64: 1, 8, 32>}, {transform_indices = @transform_1, window_bounds = array<i64: 1, 8, 32>}, {pipeline_mode = #tpu.pipeline_mode<synchronous>, transform_indices = @transform_2, window_bounds = array<i64: 1, 32>}, {pipeline_mode = #tpu.pipeline_mode<synchronous>, transform_indices = @transform_3, window_bounds = array<i64: 1, 32>}, {pipeline_mode = #tpu.pipeline_mode<synchronous>, transform_indices = @transform_4, window_bounds = array<i64: 32, 32>}, {pipeline_mode = #tpu.pipeline_mode<synchronous>, transform_indices = @transform_5, window_bounds = array<i64: 32, 32>}, {pipeline_mode = #tpu.pipeline_mode<synchronous>, transform_indices = @transform_6, window_bounds = array<i64: 32, 32>}, {pipeline_mode = #tpu.pipeline_mode<synchronous>, transform_indices = @transform_7, window_bounds = array<i64: 32, 32>}, {pipeline_mode = #tpu.pipeline_mode<synchronous>, transform_indices = @transform_8, window_bounds = array<i64: 1, 32>}, {pipeline_mode = #tpu.pipeline_mode<synchronous>, transform_indices = @transform_9, window_bounds = array<i64: 1, 32>}, {pipeline_mode = #tpu.pipeline_mode<synchronous>, transform_indices = @transform_10, window_bounds = array<i64: 1, 32>}, {pipeline_mode = #tpu.pipeline_mode<synchronous>, transform_indices = @transform_11, window_bounds = array<i64: 32, 128>}, {pipeline_mode = #tpu.pipeline_mode<synchronous>, transform_indices = @transform_12, window_bounds = array<i64: 1, 128>}, {pipeline_mode = #tpu.pipeline_mode<synchronous>, transform_indices = @transform_13, window_bounds = array<i64: 128, 32>}, {pipeline_mode = #tpu.pipeline_mode<synchronous>, transform_indices = @transform_14, window_bounds = array<i64: 1, 32>}, {transform_indices = @transform_15, window_bounds = array<i64: 1, 8, 32>}]} {
    %c0_i32 = arith.constant 0 : i32
    %0 = arith.cmpi eq, %arg1, %c0_i32 : i32
    %1 = arith.extui %0 : i1 to i32
    %c0_i32_0 = arith.constant 0 : i32
    %2 = arith.cmpi ne, %1, %c0_i32_0 : i32
    scf.if %2 {
      %c0_72 = arith.constant 0 : index
      %c0_73 = arith.constant 0 : index
      %c0_74 = arith.constant 0 : index
      %170 = vector.load %arg3[%c0_72, %c0_73, %c0_74] : memref<1x8x32xf32, #tpu.memory_space<vmem>>, vector<1x8x32xf32>
      %171 = vector.shape_cast %170 : vector<1x8x32xf32> to vector<8x32xf32>
      %c0_75 = arith.constant 0 : index
      %c0_76 = arith.constant 0 : index
      %172 = vector.load %arg4[%c0_75, %c0_76] : memref<1x32xf32, #tpu.memory_space<vmem>>, vector<1x32xf32>
      %c0_77 = arith.constant 0 : index
      %c0_78 = arith.constant 0 : index
      %173 = vector.load %arg5[%c0_77, %c0_78] : memref<1x32xf32, #tpu.memory_space<vmem>>, vector<1x32xf32>
      %cst_79 = arith.constant dense<0.000000e+00> : vector<8xf32>
      %174 = vector.multi_reduction <add>, %171, %cst_79 [1] : vector<8x32xf32> to vector<8xf32>
      %175 = vector.shape_cast %174 : vector<8xf32> to vector<8x1xf32>
      %cst_80 = arith.constant 3.200000e+01 : f32
      %176 = vector.broadcast %cst_80 : f32 to vector<8x1xf32>
      %177 = arith.divf %175, %176 : vector<8x1xf32>
      %178 = vector.broadcast %177 : vector<8x1xf32> to vector<8x32xf32>
      %179 = arith.subf %171, %178 : vector<8x32xf32>
      %180 = arith.mulf %179, %179 : vector<8x32xf32>
      %cst_81 = arith.constant dense<0.000000e+00> : vector<8xf32>
      %181 = vector.multi_reduction <add>, %180, %cst_81 [1] : vector<8x32xf32> to vector<8xf32>
      %182 = vector.shape_cast %181 : vector<8xf32> to vector<8x1xf32>
      %cst_82 = arith.constant 3.200000e+01 : f32
      %183 = vector.broadcast %cst_82 : f32 to vector<8x1xf32>
      %184 = arith.divf %182, %183 : vector<8x1xf32>
      %185 = vector.broadcast %177 : vector<8x1xf32> to vector<8x32xf32>
      %186 = arith.subf %171, %185 : vector<8x32xf32>
      %cst_83 = arith.constant 9.99999974E-6 : f32
      %187 = vector.broadcast %cst_83 : f32 to vector<8x1xf32>
      %188 = arith.addf %184, %187 : vector<8x1xf32>
      %189 = math.rsqrt %188 : vector<8x1xf32>
      %190 = vector.broadcast %189 : vector<8x1xf32> to vector<8x32xf32>
      %191 = arith.mulf %186, %190 : vector<8x32xf32>
      %192 = vector.broadcast %172 : vector<1x32xf32> to vector<8x32xf32>
      %193 = arith.mulf %191, %192 : vector<8x32xf32>
      %194 = vector.broadcast %173 : vector<1x32xf32> to vector<8x32xf32>
      %195 = arith.addf %193, %194 : vector<8x32xf32>
      %196 = arith.truncf %195 : vector<8x32xf32> to vector<8x32xbf16>
      %c0_84 = arith.constant 0 : index
      %c0_85 = arith.constant 0 : index
      %197 = vector.load %arg7[%c0_84, %c0_85] : memref<32x32xbf16, #tpu.memory_space<vmem>>, vector<32x32xbf16>
      %cst_86 = arith.constant dense<0.000000e+00> : vector<8x32xf32>
      %198 = tpu.matmul %196, %197, %cst_86 {dimension_numbers = #tpu.dot_dimension_numbers<[1], [0], [0], [1], [0, 0, 1, 1], [], []>} : vector<8x32xbf16>, vector<32x32xbf16>, vector<8x32xf32> -> vector<8x32xf32>
      %199 = arith.truncf %198 : vector<8x32xf32> to vector<8x32xbf16>
      %c0_87 = arith.constant 0 : index
      %c0_88 = arith.constant 0 : index
      %200 = vector.load %arg18[%c0_87, %c0_88] : memref<8x32xbf16, #tpu.memory_space<vmem>>, vector<8x32xbf16>
      tpu.vector_store %arg18[%c0_87, %c0_88], %199 {strides = array<i32>} : memref<8x32xbf16, #tpu.memory_space<vmem>>, vector<8x32xbf16>,
      %c0_89 = arith.constant 0 : index
      %c0_90 = arith.constant 0 : index
      %201 = vector.load %arg8[%c0_89, %c0_90] : memref<32x32xbf16, #tpu.memory_space<vmem>>, vector<32x32xbf16>
      %cst_91 = arith.constant dense<0.000000e+00> : vector<8x32xf32>
      %202 = tpu.matmul %196, %201, %cst_91 {dimension_numbers = #tpu.dot_dimension_numbers<[1], [0], [0], [1], [0, 0, 1, 1], [], []>} : vector<8x32xbf16>, vector<32x32xbf16>, vector<8x32xf32> -> vector<8x32xf32>
      %203 = arith.truncf %202 : vector<8x32xf32> to vector<8x32xbf16>
      %c0_92 = arith.constant 0 : index
      %c0_93 = arith.constant 0 : index
      %204 = vector.load %arg19[%c0_92, %c0_93] : memref<8x32xbf16, #tpu.memory_space<vmem>>, vector<8x32xbf16>
      tpu.vector_store %arg19[%c0_92, %c0_93], %203 {strides = array<i32>} : memref<8x32xbf16, #tpu.memory_space<vmem>>, vector<8x32xbf16>,
    } else {
    }
    %c0 = arith.constant 0 : index
    %c0_1 = arith.constant 0 : index
    %c0_2 = arith.constant 0 : index
    %3 = vector.load %arg2[%c0, %c0_1, %c0_2] : memref<1x8x32xf32, #tpu.memory_space<vmem>>, vector<1x8x32xf32>
    %4 = vector.shape_cast %3 : vector<1x8x32xf32> to vector<8x32xf32>
    %c0_3 = arith.constant 0 : index
    %c0_4 = arith.constant 0 : index
    %5 = vector.load %arg4[%c0_3, %c0_4] : memref<1x32xf32, #tpu.memory_space<vmem>>, vector<1x32xf32>
    %c0_5 = arith.constant 0 : index
    %c0_6 = arith.constant 0 : index
    %6 = vector.load %arg5[%c0_5, %c0_6] : memref<1x32xf32, #tpu.memory_space<vmem>>, vector<1x32xf32>
    %cst = arith.constant dense<0.000000e+00> : vector<8xf32>
    %7 = vector.multi_reduction <add>, %4, %cst [1] : vector<8x32xf32> to vector<8xf32>
    %8 = vector.shape_cast %7 : vector<8xf32> to vector<8x1xf32>
    %cst_7 = arith.constant 3.200000e+01 : f32
    %9 = vector.broadcast %cst_7 : f32 to vector<8x1xf32>
    %10 = arith.divf %8, %9 : vector<8x1xf32>
    %11 = vector.broadcast %10 : vector<8x1xf32> to vector<8x32xf32>
    %12 = arith.subf %4, %11 : vector<8x32xf32>
    %13 = arith.mulf %12, %12 : vector<8x32xf32>
    %cst_8 = arith.constant dense<0.000000e+00> : vector<8xf32>
    %14 = vector.multi_reduction <add>, %13, %cst_8 [1] : vector<8x32xf32> to vector<8xf32>
    %15 = vector.shape_cast %14 : vector<8xf32> to vector<8x1xf32>
    %cst_9 = arith.constant 3.200000e+01 : f32
    %16 = vector.broadcast %cst_9 : f32 to vector<8x1xf32>
    %17 = arith.divf %15, %16 : vector<8x1xf32>
    %18 = vector.broadcast %10 : vector<8x1xf32> to vector<8x32xf32>
    %19 = arith.subf %4, %18 : vector<8x32xf32>
    %cst_10 = arith.constant 9.99999974E-6 : f32
    %20 = vector.broadcast %cst_10 : f32 to vector<8x1xf32>
    %21 = arith.addf %17, %20 : vector<8x1xf32>
    %22 = math.rsqrt %21 : vector<8x1xf32>
    %23 = vector.broadcast %22 : vector<8x1xf32> to vector<8x32xf32>
    %24 = arith.mulf %19, %23 : vector<8x32xf32>
    %25 = vector.broadcast %5 : vector<1x32xf32> to vector<8x32xf32>
    %26 = arith.mulf %24, %25 : vector<8x32xf32>
    %27 = vector.broadcast %6 : vector<1x32xf32> to vector<8x32xf32>
    %28 = arith.addf %26, %27 : vector<8x32xf32>
    %29 = arith.truncf %28 : vector<8x32xf32> to vector<8x32xbf16>
    %c0_11 = arith.constant 0 : index
    %c0_12 = arith.constant 0 : index
    %30 = vector.load %arg6[%c0_11, %c0_12] : memref<32x32xbf16, #tpu.memory_space<vmem>>, vector<32x32xbf16>
    %cst_13 = arith.constant dense<0.000000e+00> : vector<8x32xf32>
    %31 = tpu.matmul %29, %30, %cst_13 {dimension_numbers = #tpu.dot_dimension_numbers<[1], [0], [0], [1], [0, 0, 1, 1], [], []>} : vector<8x32xbf16>, vector<32x32xbf16>, vector<8x32xf32> -> vector<8x32xf32>
    %cst_14 = arith.constant 0.353553385 : f32
    %32 = vector.broadcast %cst_14 : f32 to vector<8x32xf32>
    %33 = arith.mulf %31, %32 : vector<8x32xf32>
    %34 = arith.truncf %33 : vector<8x32xf32> to vector<8x32xbf16>
    %c0_15 = arith.constant 0 : index
    %c0_16 = arith.constant 0 : index
    %35 = vector.load %arg18[%c0_15, %c0_16] : memref<8x32xbf16, #tpu.memory_space<vmem>>, vector<8x32xbf16>
    %c0_17 = arith.constant 0 : index
    %c0_18 = arith.constant 0 : index
    %36 = vector.load %arg19[%c0_17, %c0_18] : memref<8x32xbf16, #tpu.memory_space<vmem>>, vector<8x32xbf16>
    %cst_19 = arith.constant 0.000000e+00 : f32
    %37 = vector.broadcast %cst_19 : f32 to vector<8x32xf32>
    %38 = vector.extract_strided_slice %34 {offsets = [0, 0], sizes = [8, 8], strides = [1, 1]} : vector<8x32xbf16> to vector<8x8xbf16>
    %39 = vector.extract_strided_slice %35 {offsets = [0, 0], sizes = [8, 8], strides = [1, 1]} : vector<8x32xbf16> to vector<8x8xbf16>
    %cst_20 = arith.constant dense<0.000000e+00> : vector<8x8xf32>
    %40 = tpu.matmul %38, %39, %cst_20 {dimension_numbers = #tpu.dot_dimension_numbers<[1], [1], [0], [0], [0, 0, 1, 0], [], []>} : vector<8x8xbf16>, vector<8x8xbf16>, vector<8x8xf32> -> vector<8x8xf32>
    %cst_21 = arith.constant dense<0xFF800000> : vector<8xf32>
    %41 = vector.multi_reduction <maximumf>, %40, %cst_21 [1] : vector<8x8xf32> to vector<8xf32>
    %42 = vector.shape_cast %41 : vector<8xf32> to vector<8x1xf32>
    %43 = vector.broadcast %42 : vector<8x1xf32> to vector<8x8xf32>
    %44 = arith.subf %40, %43 : vector<8x8xf32>
    %45 = math.exp %44 : vector<8x8xf32>
    %cst_22 = arith.constant dense<0.000000e+00> : vector<8xf32>
    %46 = vector.multi_reduction <add>, %45, %cst_22 [1] : vector<8x8xf32> to vector<8xf32>
    %47 = vector.shape_cast %46 : vector<8xf32> to vector<8x1xf32>
    %48 = tpu.reciprocal %47 {approx = true} : vector<8x1xf32> -> vector<8x1xf32>
    %49 = vector.broadcast %48 : vector<8x1xf32> to vector<8x8xf32>
    %50 = arith.mulf %45, %49 : vector<8x8xf32>
    %51 = arith.truncf %50 : vector<8x8xf32> to vector<8x8xbf16>
    %52 = vector.extract_strided_slice %36 {offsets = [0, 0], sizes = [8, 8], strides = [1, 1]} : vector<8x32xbf16> to vector<8x8xbf16>
    %cst_23 = arith.constant dense<0.000000e+00> : vector<8x8xf32>
    %53 = tpu.matmul %51, %52, %cst_23 {dimension_numbers = #tpu.dot_dimension_numbers<[1], [0], [0], [1], [0, 0, 1, 1], [], []>} : vector<8x8xbf16>, vector<8x8xbf16>, vector<8x8xf32> -> vector<8x8xf32>
    %54 = arith.truncf %53 : vector<8x8xf32> to vector<8x8xbf16>
    %c0_24 = arith.constant 0 : index
    %c0_25 = arith.constant 0 : index
    %55 = vector.load %arg9[%c0_24, %c0_25] : memref<32x32xbf16, #tpu.memory_space<vmem>>, vector<8x32xbf16>
    %cst_26 = arith.constant dense<0.000000e+00> : vector<8x32xf32>
    %56 = tpu.matmul %54, %55, %cst_26 {dimension_numbers = #tpu.dot_dimension_numbers<[1], [0], [0], [1], [0, 0, 1, 1], [], []>} : vector<8x8xbf16>, vector<8x32xbf16>, vector<8x32xf32> -> vector<8x32xf32>
    %57 = arith.addf %37, %56 : vector<8x32xf32>
    %58 = vector.extract_strided_slice %34 {offsets = [0, 8], sizes = [8, 8], strides = [1, 1]} : vector<8x32xbf16> to vector<8x8xbf16>
    %59 = vector.extract_strided_slice %35 {offsets = [0, 8], sizes = [8, 8], strides = [1, 1]} : vector<8x32xbf16> to vector<8x8xbf16>
    %cst_27 = arith.constant dense<0.000000e+00> : vector<8x8xf32>
    %60 = tpu.matmul %58, %59, %cst_27 {dimension_numbers = #tpu.dot_dimension_numbers<[1], [1], [0], [0], [0, 0, 1, 0], [], []>} : vector<8x8xbf16>, vector<8x8xbf16>, vector<8x8xf32> -> vector<8x8xf32>
    %cst_28 = arith.constant dense<0xFF800000> : vector<8xf32>
    %61 = vector.multi_reduction <maximumf>, %60, %cst_28 [1] : vector<8x8xf32> to vector<8xf32>
    %62 = vector.shape_cast %61 : vector<8xf32> to vector<8x1xf32>
    %63 = vector.broadcast %62 : vector<8x1xf32> to vector<8x8xf32>
    %64 = arith.subf %60, %63 : vector<8x8xf32>
    %65 = math.exp %64 : vector<8x8xf32>
    %cst_29 = arith.constant dense<0.000000e+00> : vector<8xf32>
    %66 = vector.multi_reduction <add>, %65, %cst_29 [1] : vector<8x8xf32> to vector<8xf32>
    %67 = vector.shape_cast %66 : vector<8xf32> to vector<8x1xf32>
    %68 = tpu.reciprocal %67 {approx = true} : vector<8x1xf32> -> vector<8x1xf32>
    %69 = vector.broadcast %68 : vector<8x1xf32> to vector<8x8xf32>
    %70 = arith.mulf %65, %69 : vector<8x8xf32>
    %71 = arith.truncf %70 : vector<8x8xf32> to vector<8x8xbf16>
    %72 = vector.extract_strided_slice %36 {offsets = [0, 8], sizes = [8, 8], strides = [1, 1]} : vector<8x32xbf16> to vector<8x8xbf16>
    %cst_30 = arith.constant dense<0.000000e+00> : vector<8x8xf32>
    %73 = tpu.matmul %71, %72, %cst_30 {dimension_numbers = #tpu.dot_dimension_numbers<[1], [0], [0], [1], [0, 0, 1, 1], [], []>} : vector<8x8xbf16>, vector<8x8xbf16>, vector<8x8xf32> -> vector<8x8xf32>
    %74 = arith.truncf %73 : vector<8x8xf32> to vector<8x8xbf16>
    %c8 = arith.constant 8 : index
    %c0_31 = arith.constant 0 : index
    %75 = vector.load %arg9[%c8, %c0_31] : memref<32x32xbf16, #tpu.memory_space<vmem>>, vector<8x32xbf16>
    %cst_32 = arith.constant dense<0.000000e+00> : vector<8x32xf32>
    %76 = tpu.matmul %74, %75, %cst_32 {dimension_numbers = #tpu.dot_dimension_numbers<[1], [0], [0], [1], [0, 0, 1, 1], [], []>} : vector<8x8xbf16>, vector<8x32xbf16>, vector<8x32xf32> -> vector<8x32xf32>
    %77 = arith.addf %57, %76 : vector<8x32xf32>
    %78 = vector.extract_strided_slice %34 {offsets = [0, 16], sizes = [8, 8], strides = [1, 1]} : vector<8x32xbf16> to vector<8x8xbf16>
    %79 = vector.extract_strided_slice %35 {offsets = [0, 16], sizes = [8, 8], strides = [1, 1]} : vector<8x32xbf16> to vector<8x8xbf16>
    %cst_33 = arith.constant dense<0.000000e+00> : vector<8x8xf32>
    %80 = tpu.matmul %78, %79, %cst_33 {dimension_numbers = #tpu.dot_dimension_numbers<[1], [1], [0], [0], [0, 0, 1, 0], [], []>} : vector<8x8xbf16>, vector<8x8xbf16>, vector<8x8xf32> -> vector<8x8xf32>
    %cst_34 = arith.constant dense<0xFF800000> : vector<8xf32>
    %81 = vector.multi_reduction <maximumf>, %80, %cst_34 [1] : vector<8x8xf32> to vector<8xf32>
    %82 = vector.shape_cast %81 : vector<8xf32> to vector<8x1xf32>
    %83 = vector.broadcast %82 : vector<8x1xf32> to vector<8x8xf32>
    %84 = arith.subf %80, %83 : vector<8x8xf32>
    %85 = math.exp %84 : vector<8x8xf32>
    %cst_35 = arith.constant dense<0.000000e+00> : vector<8xf32>
    %86 = vector.multi_reduction <add>, %85, %cst_35 [1] : vector<8x8xf32> to vector<8xf32>
    %87 = vector.shape_cast %86 : vector<8xf32> to vector<8x1xf32>
    %88 = tpu.reciprocal %87 {approx = true} : vector<8x1xf32> -> vector<8x1xf32>
    %89 = vector.broadcast %88 : vector<8x1xf32> to vector<8x8xf32>
    %90 = arith.mulf %85, %89 : vector<8x8xf32>
    %91 = arith.truncf %90 : vector<8x8xf32> to vector<8x8xbf16>
    %92 = vector.extract_strided_slice %36 {offsets = [0, 16], sizes = [8, 8], strides = [1, 1]} : vector<8x32xbf16> to vector<8x8xbf16>
    %cst_36 = arith.constant dense<0.000000e+00> : vector<8x8xf32>
    %93 = tpu.matmul %91, %92, %cst_36 {dimension_numbers = #tpu.dot_dimension_numbers<[1], [0], [0], [1], [0, 0, 1, 1], [], []>} : vector<8x8xbf16>, vector<8x8xbf16>, vector<8x8xf32> -> vector<8x8xf32>
    %94 = arith.truncf %93 : vector<8x8xf32> to vector<8x8xbf16>
    %c16 = arith.constant 16 : index
    %c0_37 = arith.constant 0 : index
    %95 = vector.load %arg9[%c16, %c0_37] : memref<32x32xbf16, #tpu.memory_space<vmem>>, vector<8x32xbf16>
    %cst_38 = arith.constant dense<0.000000e+00> : vector<8x32xf32>
    %96 = tpu.matmul %94, %95, %cst_38 {dimension_numbers = #tpu.dot_dimension_numbers<[1], [0], [0], [1], [0, 0, 1, 1], [], []>} : vector<8x8xbf16>, vector<8x32xbf16>, vector<8x32xf32> -> vector<8x32xf32>
    %97 = arith.addf %77, %96 : vector<8x32xf32>
    %98 = vector.extract_strided_slice %34 {offsets = [0, 24], sizes = [8, 8], strides = [1, 1]} : vector<8x32xbf16> to vector<8x8xbf16>
    %99 = vector.extract_strided_slice %35 {offsets = [0, 24], sizes = [8, 8], strides = [1, 1]} : vector<8x32xbf16> to vector<8x8xbf16>
    %cst_39 = arith.constant dense<0.000000e+00> : vector<8x8xf32>
    %100 = tpu.matmul %98, %99, %cst_39 {dimension_numbers = #tpu.dot_dimension_numbers<[1], [1], [0], [0], [0, 0, 1, 0], [], []>} : vector<8x8xbf16>, vector<8x8xbf16>, vector<8x8xf32> -> vector<8x8xf32>
    %cst_40 = arith.constant dense<0xFF800000> : vector<8xf32>
    %101 = vector.multi_reduction <maximumf>, %100, %cst_40 [1] : vector<8x8xf32> to vector<8xf32>
    %102 = vector.shape_cast %101 : vector<8xf32> to vector<8x1xf32>
    %103 = vector.broadcast %102 : vector<8x1xf32> to vector<8x8xf32>
    %104 = arith.subf %100, %103 : vector<8x8xf32>
    %105 = math.exp %104 : vector<8x8xf32>
    %cst_41 = arith.constant dense<0.000000e+00> : vector<8xf32>
    %106 = vector.multi_reduction <add>, %105, %cst_41 [1] : vector<8x8xf32> to vector<8xf32>
    %107 = vector.shape_cast %106 : vector<8xf32> to vector<8x1xf32>
    %108 = tpu.reciprocal %107 {approx = true} : vector<8x1xf32> -> vector<8x1xf32>
    %109 = vector.broadcast %108 : vector<8x1xf32> to vector<8x8xf32>
    %110 = arith.mulf %105, %109 : vector<8x8xf32>
    %111 = arith.truncf %110 : vector<8x8xf32> to vector<8x8xbf16>
    %112 = vector.extract_strided_slice %36 {offsets = [0, 24], sizes = [8, 8], strides = [1, 1]} : vector<8x32xbf16> to vector<8x8xbf16>
    %cst_42 = arith.constant dense<0.000000e+00> : vector<8x8xf32>
    %113 = tpu.matmul %111, %112, %cst_42 {dimension_numbers = #tpu.dot_dimension_numbers<[1], [0], [0], [1], [0, 0, 1, 1], [], []>} : vector<8x8xbf16>, vector<8x8xbf16>, vector<8x8xf32> -> vector<8x8xf32>
    %114 = arith.truncf %113 : vector<8x8xf32> to vector<8x8xbf16>
    %c24 = arith.constant 24 : index
    %c0_43 = arith.constant 0 : index
    %115 = vector.load %arg9[%c24, %c0_43] : memref<32x32xbf16, #tpu.memory_space<vmem>>, vector<8x32xbf16>
    %cst_44 = arith.constant dense<0.000000e+00> : vector<8x32xf32>
    %116 = tpu.matmul %114, %115, %cst_44 {dimension_numbers = #tpu.dot_dimension_numbers<[1], [0], [0], [1], [0, 0, 1, 1], [], []>} : vector<8x8xbf16>, vector<8x32xbf16>, vector<8x32xf32> -> vector<8x32xf32>
    %117 = arith.addf %97, %116 : vector<8x32xf32>
    %118 = arith.addf %4, %117 : vector<8x32xf32>
    %c0_45 = arith.constant 0 : index
    %c0_46 = arith.constant 0 : index
    %119 = vector.load %arg10[%c0_45, %c0_46] : memref<1x32xf32, #tpu.memory_space<vmem>>, vector<1x32xf32>
    %120 = vector.broadcast %119 : vector<1x32xf32> to vector<8x32xf32>
    %121 = arith.addf %118, %120 : vector<8x32xf32>
    %c0_47 = arith.constant 0 : index
    %c0_48 = arith.constant 0 : index
    %122 = vector.load %arg11[%c0_47, %c0_48] : memref<1x32xf32, #tpu.memory_space<vmem>>, vector<1x32xf32>
    %c0_49 = arith.constant 0 : index
    %c0_50 = arith.constant 0 : index
    %123 = vector.load %arg12[%c0_49, %c0_50] : memref<1x32xf32, #tpu.memory_space<vmem>>, vector<1x32xf32>
    %cst_51 = arith.constant dense<0.000000e+00> : vector<8xf32>
    %124 = vector.multi_reduction <add>, %121, %cst_51 [1] : vector<8x32xf32> to vector<8xf32>
    %125 = vector.shape_cast %124 : vector<8xf32> to vector<8x1xf32>
    %cst_52 = arith.constant 3.200000e+01 : f32
    %126 = vector.broadcast %cst_52 : f32 to vector<8x1xf32>
    %127 = arith.divf %125, %126 : vector<8x1xf32>
    %128 = vector.broadcast %127 : vector<8x1xf32> to vector<8x32xf32>
    %129 = arith.subf %121, %128 : vector<8x32xf32>
    %130 = arith.mulf %129, %129 : vector<8x32xf32>
    %cst_53 = arith.constant dense<0.000000e+00> : vector<8xf32>
    %131 = vector.multi_reduction <add>, %130, %cst_53 [1] : vector<8x32xf32> to vector<8xf32>
    %132 = vector.shape_cast %131 : vector<8xf32> to vector<8x1xf32>
    %cst_54 = arith.constant 3.200000e+01 : f32
    %133 = vector.broadcast %cst_54 : f32 to vector<8x1xf32>
    %134 = arith.divf %132, %133 : vector<8x1xf32>
    %135 = vector.broadcast %127 : vector<8x1xf32> to vector<8x32xf32>
    %136 = arith.subf %121, %135 : vector<8x32xf32>
    %cst_55 = arith.constant 9.99999974E-6 : f32
    %137 = vector.broadcast %cst_55 : f32 to vector<8x1xf32>
    %138 = arith.addf %134, %137 : vector<8x1xf32>
    %139 = math.rsqrt %138 : vector<8x1xf32>
    %140 = vector.broadcast %139 : vector<8x1xf32> to vector<8x32xf32>
    %141 = arith.mulf %136, %140 : vector<8x32xf32>
    %142 = vector.broadcast %122 : vector<1x32xf32> to vector<8x32xf32>
    %143 = arith.mulf %141, %142 : vector<8x32xf32>
    %144 = vector.broadcast %123 : vector<1x32xf32> to vector<8x32xf32>
    %145 = arith.addf %143, %144 : vector<8x32xf32>
    %146 = arith.truncf %145 : vector<8x32xf32> to vector<8x32xbf16>
    %c0_56 = arith.constant 0 : index
    %c0_57 = arith.constant 0 : index
    %147 = vector.load %arg13[%c0_56, %c0_57] : memref<32x128xbf16, #tpu.memory_space<vmem>>, vector<32x128xbf16>
    %cst_58 = arith.constant dense<0.000000e+00> : vector<8x128xf32>
    %148 = tpu.matmul %146, %147, %cst_58 {dimension_numbers = #tpu.dot_dimension_numbers<[1], [0], [0], [1], [0, 0, 1, 1], [], []>} : vector<8x32xbf16>, vector<32x128xbf16>, vector<8x128xf32> -> vector<8x128xf32>
    %c0_59 = arith.constant 0 : index
    %c0_60 = arith.constant 0 : index
    %149 = vector.load %arg14[%c0_59, %c0_60] : memref<1x128xf32, #tpu.memory_space<vmem>>, vector<1x128xf32>
    %150 = vector.broadcast %149 : vector<1x128xf32> to vector<8x128xf32>
    %151 = arith.addf %148, %150 : vector<8x128xf32>
    %cst_61 = arith.constant 5.000000e-01 : f32
    %152 = vector.broadcast %cst_61 : f32 to vector<8x128xf32>
    %153 = arith.mulf %152, %151 : vector<8x128xf32>
    %cst_62 = arith.constant 0.707106769 : f32
    %154 = vector.broadcast %cst_62 : f32 to vector<8x128xf32>
    %155 = arith.mulf %151, %154 : vector<8x128xf32>
    %156 = math.erf %155 : vector<8x128xf32>
    %cst_63 = arith.constant 1.000000e+00 : f32
    %157 = vector.broadcast %cst_63 : f32 to vector<8x128xf32>
    %158 = arith.addf %157, %156 : vector<8x128xf32>
    %159 = arith.mulf %153, %158 : vector<8x128xf32>
    %160 = arith.truncf %159 : vector<8x128xf32> to vector<8x128xbf16>
    %c0_64 = arith.constant 0 : index
    %c0_65 = arith.constant 0 : index
    %161 = vector.load %arg15[%c0_64, %c0_65] : memref<128x32xbf16, #tpu.memory_space<vmem>>, vector<128x32xbf16>
    %cst_66 = arith.constant dense<0.000000e+00> : vector<8x32xf32>
    %162 = tpu.matmul %160, %161, %cst_66 {dimension_numbers = #tpu.dot_dimension_numbers<[1], [0], [0], [1], [0, 0, 1, 1], [], []>} : vector<8x128xbf16>, vector<128x32xbf16>, vector<8x32xf32> -> vector<8x32xf32>
    %c0_67 = arith.constant 0 : index
    %c0_68 = arith.constant 0 : index
    %163 = vector.load %arg16[%c0_67, %c0_68] : memref<1x32xf32, #tpu.memory_space<vmem>>, vector<1x32xf32>
    %164 = vector.broadcast %163 : vector<1x32xf32> to vector<8x32xf32>
    %165 = arith.addf %162, %164 : vector<8x32xf32>
    %166 = arith.addf %121, %165 : vector<8x32xf32>
    %c0_69 = arith.constant 0 : index
    %c0_70 = arith.constant 0 : index
    %c0_71 = arith.constant 0 : index
    %167 = vector.load %arg17[%c0_69, %c0_70, %c0_71] : memref<1x8x32xf32, #tpu.memory_space<vmem>>, vector<1x8x32xf32>
    %168 = vector.shape_cast %167 : vector<1x8x32xf32> to vector<8x32xf32>
    %169 = vector.shape_cast %166 : vector<8x32xf32> to vector<1x8x32xf32>
    tpu.vector_store %arg17[%c0_69, %c0_70, %c0_71], %169 {strides = array<i32>} : memref<1x8x32xf32, #tpu.memory_space<vmem>>, vector<1x8x32xf32>,
    return
  }
  func.func @transform_0(%arg0: i32, %arg1: i32) -> (i32, i32, i32) {
    %c0_i32 = arith.constant 0 : i32
    %c0_i32_0 = arith.constant 0 : i32
    return %arg0, %arg1, %c0_i32 : i32, i32, i32
  }
  func.func @transform_1(%arg0: i32, %arg1: i32) -> (i32, i32, i32) {
    %c0_i32 = arith.constant 0 : i32
    %c0_i32_0 = arith.constant 0 : i32
    %c0_i32_1 = arith.constant 0 : i32
    return %arg0, %c0_i32, %c0_i32_0 : i32, i32, i32
  }
  func.func @transform_2(%arg0: i32, %arg1: i32) -> (i32, i32) {
    %c0_i32 = arith.constant 0 : i32
    %c0_i32_0 = arith.constant 0 : i32
    %c0_i32_1 = arith.constant 0 : i32
    return %c0_i32, %c0_i32_0 : i32, i32
  }
  func.func @transform_3(%arg0: i32, %arg1: i32) -> (i32, i32) {
    %c0_i32 = arith.constant 0 : i32
    %c0_i32_0 = arith.constant 0 : i32
    %c0_i32_1 = arith.constant 0 : i32
    return %c0_i32, %c0_i32_0 : i32, i32
  }
  func.func @transform_4(%arg0: i32, %arg1: i32) -> (i32, i32) {
    %c0_i32 = arith.constant 0 : i32
    %c0_i32_0 = arith.constant 0 : i32
    %c0_i32_1 = arith.constant 0 : i32
    return %c0_i32, %c0_i32_0 : i32, i32
  }
  func.func @transform_5(%arg0: i32, %arg1: i32) -> (i32, i32) {
    %c0_i32 = arith.constant 0 : i32
    %c0_i32_0 = arith.constant 0 : i32
    %c0_i32_1 = arith.constant 0 : i32
    return %c0_i32, %c0_i32_0 : i32, i32
  }
  func.func @transform_6(%arg0: i32, %arg1: i32) -> (i32, i32) {
    %c0_i32 = arith.constant 0 : i32
    %c0_i32_0 = arith.constant 0 : i32
    %c0_i32_1 = arith.constant 0 : i32
    return %c0_i32, %c0_i32_0 : i32, i32
  }
  func.func @transform_7(%arg0: i32, %arg1: i32) -> (i32, i32) {
    %c0_i32 = arith.constant 0 : i32
    %c0_i32_0 = arith.constant 0 : i32
    %c0_i32_1 = arith.constant 0 : i32
    return %c0_i32, %c0_i32_0 : i32, i32
  }
  func.func @transform_8(%arg0: i32, %arg1: i32) -> (i32, i32) {
    %c0_i32 = arith.constant 0 : i32
    %c0_i32_0 = arith.constant 0 : i32
    %c0_i32_1 = arith.constant 0 : i32
    return %c0_i32, %c0_i32_0 : i32, i32
  }
  func.func @transform_9(%arg0: i32, %arg1: i32) -> (i32, i32) {
    %c0_i32 = arith.constant 0 : i32
    %c0_i32_0 = arith.constant 0 : i32
    %c0_i32_1 = arith.constant 0 : i32
    return %c0_i32, %c0_i32_0 : i32, i32
  }
  func.func @transform_10(%arg0: i32, %arg1: i32) -> (i32, i32) {
    %c0_i32 = arith.constant 0 : i32
    %c0_i32_0 = arith.constant 0 : i32
    %c0_i32_1 = arith.constant 0 : i32
    return %c0_i32, %c0_i32_0 : i32, i32
  }
  func.func @transform_11(%arg0: i32, %arg1: i32) -> (i32, i32) {
    %c0_i32 = arith.constant 0 : i32
    %c0_i32_0 = arith.constant 0 : i32
    %c0_i32_1 = arith.constant 0 : i32
    return %c0_i32, %c0_i32_0 : i32, i32
  }
  func.func @transform_12(%arg0: i32, %arg1: i32) -> (i32, i32) {
    %c0_i32 = arith.constant 0 : i32
    %c0_i32_0 = arith.constant 0 : i32
    %c0_i32_1 = arith.constant 0 : i32
    return %c0_i32, %c0_i32_0 : i32, i32
  }
  func.func @transform_13(%arg0: i32, %arg1: i32) -> (i32, i32) {
    %c0_i32 = arith.constant 0 : i32
    %c0_i32_0 = arith.constant 0 : i32
    %c0_i32_1 = arith.constant 0 : i32
    return %c0_i32, %c0_i32_0 : i32, i32
  }
  func.func @transform_14(%arg0: i32, %arg1: i32) -> (i32, i32) {
    %c0_i32 = arith.constant 0 : i32
    %c0_i32_0 = arith.constant 0 : i32
    %c0_i32_1 = arith.constant 0 : i32
    return %c0_i32, %c0_i32_0 : i32, i32
  }
  func.func @transform_15(%arg0: i32, %arg1: i32) -> (i32, i32, i32) {
    %c0_i32 = arith.constant 0 : i32
    %c0_i32_0 = arith.constant 0 : i32
    return %arg0, %arg1, %c0_i32 : i32, i32, i32
  }
}

</mosaic_0001>

<llo_original>
// kernel: tpu_custom_call.1
$region0: #{tpu_custom_call.1}
  #allocation0 [shape = 'u32[]', space=smem, size = 0x4, offset = 0x4, fixed_abs, tag = 'smem constant byte address 0x4 - core index']
  #allocation1 [shape = 'u32[144,128]{1,0:T(1,128)}', space=vmem, size = 0x12000, scoped, tag = 'internal scratch']
  #allocation2 [shape = 'bf16[8,32]{1,0:T(8,128)(2,1)}', space=vmem, size = 0x800, scoped, tag = 'scratch operand']
  #allocation3 [shape = 'bf16[8,32]{1,0:T(8,128)(2,1)}', space=vmem, size = 0x800, scoped, tag = 'scratch operand']
  %s0 = inlined_call_operand.hbm [shape: f32[2,8,32], index: 0, kind: input, shape index: {}]
  %s1 = inlined_call_operand.hbm [shape: f32[2,8,32], index: 1, kind: input, shape index: {}]
  %s2 = inlined_call_operand.hbm [shape: f32[1,32], index: 2, kind: input, shape index: {}]
  %s3 = inlined_call_operand.hbm [shape: f32[1,32], index: 3, kind: input, shape index: {}]
  %s4 = inlined_call_operand.hbm [shape: bf16[32,32], index: 4, kind: input, shape index: {}]
  %s5 = inlined_call_operand.hbm [shape: bf16[32,32], index: 5, kind: input, shape index: {}]
  %s6 = inlined_call_operand.hbm [shape: bf16[32,32], index: 6, kind: input, shape index: {}]
  %s7 = inlined_call_operand.hbm [shape: bf16[32,32], index: 7, kind: input, shape index: {}]
  %s8 = inlined_call_operand.hbm [shape: f32[1,32], index: 8, kind: input, shape index: {}]
  %s9 = inlined_call_operand.hbm [shape: f32[1,32], index: 9, kind: input, shape index: {}]
  %s10 = inlined_call_operand.hbm [shape: f32[1,32], index: 10, kind: input, shape index: {}]
  %s11 = inlined_call_operand.hbm [shape: bf16[32,128], index: 11, kind: input, shape index: {}]
  %s12 = inlined_call_operand.hbm [shape: f32[1,128], index: 12, kind: input, shape index: {}]
  %s13 = inlined_call_operand.hbm [shape: bf16[128,32], index: 13, kind: input, shape index: {}]
  %s14 = inlined_call_operand.hbm [shape: f32[1,32], index: 14, kind: input, shape index: {}]
  %s15 = inlined_call_operand.hbm [shape: f32[2,8,32], index: 15, kind: output, shape index: {}]
  %s16 = sld [smem:[#allocation0]]
  $region157: #{tpu_custom_call.1} parent=0
    _
  %s18 = ssub.s32 1, %s16
  %s19 = scalar_select 0, %s18, %s16
  $region1: #{tpu_custom_call.1} parent=0
    #allocation4 [shape = 'u8[8192]{0}', space=vmem, size = 0x2000, scoped, tag = 'input window, operand 0']
    #allocation5 [shape = 's32[2]{0}', space=sflag, size = 0x8, scoped, tag = 'scoped memory for tpu_custom_call.1']
    #allocation6 [shape = 's32[2]{0}', space=sflag, size = 0x8, scoped, tag = 'scoped memory for tpu_custom_call.1']
    #allocation7 [shape = 'u8[8192]{0}', space=vmem, size = 0x2000, scoped, tag = 'input window, operand 1']
    #allocation8 [shape = 's32[2]{0}', space=sflag, size = 0x8, scoped, tag = 'scoped memory for tpu_custom_call.1']
    #allocation9 [shape = 'u8[512]{0}', space=vmem, size = 0x400, scoped, tag = 'input window, operand 2, single buffered']
    #allocation10 [shape = 'u8[512]{0}', space=vmem, size = 0x400, scoped, tag = 'input window, operand 3, single buffered']
    #allocation11 [shape = 's32[1]{0}', space=sflag, size = 0x4, scoped, tag = 'scoped memory for tpu_custom_call.1']
    #allocation12 [shape = 'u8[8192]{0}', space=vmem, size = 0x2000, scoped, tag = 'input window, operand 4, single buffered']
    #allocation13 [shape = 'u8[8192]{0}', space=vmem, size = 0x2000, scoped, tag = 'input window, operand 5, single buffered']
    #allocation14 [shape = 's32[1]{0}', space=sflag, size = 0x4, scoped, tag = 'scoped memory for tpu_custom_call.1']
    #allocation15 [shape = 'u8[8192]{0}', space=vmem, size = 0x2000, scoped, tag = 'input window, operand 6, single buffered']
    #allocation16 [shape = 'u8[8192]{0}', space=vmem, size = 0x2000, scoped, tag = 'input window, operand 7, single buffered']
    #allocation17 [shape = 's32[1]{0}', space=sflag, size = 0x4, scoped, tag = 'scoped memory for tpu_custom_call.1']
    #allocation18 [shape = 'u8[512]{0}', space=vmem, size = 0x400, scoped, tag = 'input window, operand 8, single buffered']
    #allocation19 [shape = 'u8[512]{0}', space=vmem, size = 0x400, scoped, tag = 'input window, operand 9, single buffered']
    #allocation20 [shape = 's32[1]{0}', space=sflag, size = 0x4, scoped, tag = 'scoped memory for tpu_custom_call.1']
    #allocation21 [shape = 'u8[512]{0}', space=vmem, size = 0x400, scoped, tag = 'input window, operand 10, single buffered']
    #allocation22 [shape = 'u8[8192]{0}', space=vmem, size = 0x2000, scoped, tag = 'input window, operand 11, single buffered']
    #allocation23 [shape = 's32[1]{0}', space=sflag, size = 0x4, scoped, tag = 'scoped memory for tpu_custom_call.1']
    #allocation24 [shape = 'u8[512]{0}', space=vmem, size = 0x400, scoped, tag = 'input window, operand 12, single buffered']
    #allocation25 [shape = 'u8[32768]{0}', space=vmem, size = 0x8000, scoped, tag = 'input window, operand 13, single buffered']
    #allocation26 [shape = 's32[1]{0}', space=sflag, size = 0x4, scoped, tag = 'scoped memory for tpu_custom_call.1']
    #allocation27 [shape = 'u8[512]{0}', space=vmem, size = 0x400, scoped, tag = 'input window, operand 14, single buffered']
    #allocation28 [shape = 'u8[8192]{0}', space=vmem, size = 0x2000, scoped, tag = 'output window, operand 0']
    %20 = vsyncpa [#allocation5], 0
    %s21 = scalar_lea.sflag [#allocation5], 1
    %22 = vsyncpa %s21, 0
    %23 = vsyncpa [#allocation8], 0
    %s24 = scalar_lea.sflag [#allocation8], 1
    %25 = vsyncpa %s24, 0
    %26 = vsyncpa [#allocation11], 0
    %27 = vsyncpa [#allocation14], 0
    %28 = vsyncpa [#allocation17], 0
    %29 = vsyncpa [#allocation20], 0
    %30 = vsyncpa [#allocation23], 0
    %31 = vsyncpa [#allocation26], 0
    %32 = vsyncpa [#allocation6], 0
    %s33 = scalar_lea.sflag [#allocation6], 1
    %34 = vsyncpa %s33, 0
    loop: start=0, step=1, limit=4
    $region2: #{tpu_custom_call.1} parent=1 // loop_pre_header
      _
    $region3: #{tpu_custom_call.1} parent=1 // loop_header
      %s36 = sphi 0, %s40
      %p37 = scmp.ge.s32.totalorder %s36, 4
      %s43 = sphi 0, %s55
      %s44 = sphi 0, %s51
      %s45 = sphi 0, %s43
      %s46 = sphi 0, %s44
      %s47 = sphi 0, %s45
      %s48 = sphi 0, %s46
      %s60 = sphi 0, %s62
      %s63 = sphi 0, %s60
      %s64 = sphi 0, %s63
      %s80 = sphi 0, %s64
      %s86 = sphi 0, %s88
      %s89 = sphi 0, %s86
      %s90 = sphi 0, %s89
      %s106 = sphi 0, %s90
      %s110 = sphi 0, %s110
      %s112 = sphi 0, %s110
      %s113 = sphi 0, %s112
      %s127 = sphi 0, %s113
      %s131 = sphi 0, %s131
      %s133 = sphi 0, %s131
      %s134 = sphi 0, %s133
      %s148 = sphi 0, %s134
      %s152 = sphi 0, %s152
      %s154 = sphi 0, %s152
      %s155 = sphi 0, %s154
      %s169 = sphi 0, %s155
      %s173 = sphi 0, %s173
      %s175 = sphi 0, %s173
      %s176 = sphi 0, %s175
      %s190 = sphi 0, %s176
      %s194 = sphi 0, %s194
      %s196 = sphi 0, %s194
      %s197 = sphi 0, %s196
      %s211 = sphi 0, %s197
      %s215 = sphi 0, %s215
      %s217 = sphi 0, %s215
      %s218 = sphi 0, %s217
      %s232 = sphi 0, %s218
      %s236 = sphi 0, %s236
      %s238 = sphi 0, %s236
      %s239 = sphi 0, %s238
      %s253 = sphi 0, %s239
      %s257 = sphi 0, %s257
      %s259 = sphi 0, %s257
      %s260 = sphi 0, %s259
      %s274 = sphi 0, %s260
      %s278 = sphi 0, %s278
      %s280 = sphi 0, %s278
      %s281 = sphi 0, %s280
      %s295 = sphi 0, %s281
      %s299 = sphi 0, %s299
      %s301 = sphi 0, %s299
      %s302 = sphi 0, %s301
      %s316 = sphi 0, %s302
      %s320 = sphi 0, %s320
      %s322 = sphi 0, %s320
      %s323 = sphi 0, %s322
      %s337 = sphi 0, %s323
      %s341 = sphi 0, %s341
      %s343 = sphi 0, %s341
      %s344 = sphi 0, %s343
      %s358 = sphi 0, %s344
      %s362 = sphi 0, %s362
      %s364 = sphi 0, %s362
      %s365 = sphi 0, %s364
      %s379 = sphi 0, %s365
      %s387 = sphi 0, %s389
      %s390 = sphi 0, %s387
      %s391 = sphi 0, %s390
      %s407 = sphi 0, %s391
    $region4: #{tpu_custom_call.1} parent=1 // loop_header_branch
      %39 = sbr.rel (%p37) target = $region8
    $region5: #{tpu_custom_call.1} parent=1 // loop_body
      %s41 = ssub.s32 %s36, 1
      %s42 = ssub.s32 %s36, 2
      %s49 = sadd.s32 1, %s44
      %p50 = scmp.ge.s32.totalorder %s49, 1
      %s51 = scalar_select %p50, 0, %s49
      %s52 = sadd.s32 1, %s43
      %s53 = scalar_select %p50, %s52, %s43
      %p54 = scmp.ge.s32.totalorder %s53, 2
      %s55 = scalar_select %p54, 0, %s53
      %s56 = ssub.s32 %s43, %s55
      %s57 = ssub.s32 %s44, %s51
      %s58 = sor.u32 %s56, %s57
      %p59 = scmp.eq.s32.totalorder %s58, 0
      %s61 = sadd.s32 %s60, 1
      %s62 = scalar_select %p59, %s60, %s61
      %p65 = pneg %p59
      %p66 = scmp.eq.s32.totalorder %s36, 1
      %p67 = por %p65, %p66
      %p68 = scmp.ne.s32.totalorder %s60, %s63
      %p69 = scmp.eq.s32.totalorder %s36, 0
      %p70 = por %p68, %p69
      %p71 = scmp.ne.s32.totalorder %s60, %s63
      %p72 = scmp.eq.s32.totalorder %s41, 1
      %p73 = por %p71, %p72
      %p74 = scmp.ne.s32.totalorder %s63, %s64
      %p75 = scmp.eq.s32.totalorder %s41, 0
      %p76 = por %p74, %p75
      %p77 = scmp.ne.s32.totalorder %s63, %s64
      %p78 = scmp.eq.s32.totalorder %s42, 1
      %p79 = por %p77, %p78
      %p81 = scmp.ne.s32.totalorder %s64, %s80
      %p82 = scmp.eq.s32.totalorder %s42, 0
      %p83 = por %p81, %p82
      %s84 = ssub.s32 %s43, %s55
      %p85 = scmp.eq.s32.totalorder %s84, 0
      %s87 = sadd.s32 %s86, 1
      %s88 = scalar_select %p85, %s86, %s87
      %p91 = pneg %p85
      %p92 = scmp.eq.s32.totalorder %s36, 1
      %p93 = por %p91, %p92
      %p94 = scmp.ne.s32.totalorder %s86, %s89
      %p95 = scmp.eq.s32.totalorder %s36, 0
      %p96 = por %p94, %p95
      %p97 = scmp.ne.s32.totalorder %s86, %s89
      %p98 = scmp.eq.s32.totalorder %s41, 1
      %p99 = por %p97, %p98
      %p100 = scmp.ne.s32.totalorder %s89, %s90
      %p101 = scmp.eq.s32.totalorder %s41, 0
      %p102 = por %p100, %p101
      %p103 = scmp.ne.s32.totalorder %s89, %s90
      %p104 = scmp.eq.s32.totalorder %s42, 1
      %p105 = por %p103, %p104
      %p107 = scmp.ne.s32.totalorder %s90, %s106
      %p108 = scmp.eq.s32.totalorder %s42, 0
      %p109 = por %p107, %p108
      %s111 = sadd.s32 %s110, 1
      %p114 = scmp.eq.s32.totalorder %s36, 1
      %p115 = scmp.ne.s32.totalorder %s110, %s112
      %p116 = scmp.eq.s32.totalorder %s36, 0
      %p117 = por %p115, %p116
      %p118 = scmp.ne.s32.totalorder %s110, %s112
      %p119 = scmp.eq.s32.totalorder %s41, 1
      %p120 = por %p118, %p119
      %p121 = scmp.ne.s32.totalorder %s112, %s113
      %p122 = scmp.eq.s32.totalorder %s41, 0
      %p123 = por %p121, %p122
      %p124 = scmp.ne.s32.totalorder %s112, %s113
      %p125 = scmp.eq.s32.totalorder %s42, 1
      %p126 = por %p124, %p125
      %p128 = scmp.ne.s32.totalorder %s113, %s127
      %p129 = scmp.eq.s32.totalorder %s42, 0
      %p130 = por %p128, %p129
      %s132 = sadd.s32 %s131, 1
      %p135 = scmp.eq.s32.totalorder %s36, 1
      %p136 = scmp.ne.s32.totalorder %s131, %s133
      %p137 = scmp.eq.s32.totalorder %s36, 0
      %p138 = por %p136, %p137
      %p139 = scmp.ne.s32.totalorder %s131, %s133
      %p140 = scmp.eq.s32.totalorder %s41, 1
      %p141 = por %p139, %p140
      %p142 = scmp.ne.s32.totalorder %s133, %s134
      %p143 = scmp.eq.s32.totalorder %s41, 0
      %p144 = por %p142, %p143
      %p145 = scmp.ne.s32.totalorder %s133, %s134
      %p146 = scmp.eq.s32.totalorder %s42, 1
      %p147 = por %p145, %p146
      %p149 = scmp.ne.s32.totalorder %s134, %s148
      %p150 = scmp.eq.s32.totalorder %s42, 0
      %p151 = por %p149, %p150
      %s153 = sadd.s32 %s152, 1
      %p156 = scmp.eq.s32.totalorder %s36, 1
      %p157 = scmp.ne.s32.totalorder %s152, %s154
      %p158 = scmp.eq.s32.totalorder %s36, 0
      %p159 = por %p157, %p158
      %p160 = scmp.ne.s32.totalorder %s152, %s154
      %p161 = scmp.eq.s32.totalorder %s41, 1
      %p162 = por %p160, %p161
      %p163 = scmp.ne.s32.totalorder %s154, %s155
      %p164 = scmp.eq.s32.totalorder %s41, 0
      %p165 = por %p163, %p164
      %p166 = scmp.ne.s32.totalorder %s154, %s155
      %p167 = scmp.eq.s32.totalorder %s42, 1
      %p168 = por %p166, %p167
      %p170 = scmp.ne.s32.totalorder %s155, %s169
      %p171 = scmp.eq.s32.totalorder %s42, 0
      %p172 = por %p170, %p171
      %s174 = sadd.s32 %s173, 1
      %p177 = scmp.eq.s32.totalorder %s36, 1
      %p178 = scmp.ne.s32.totalorder %s173, %s175
      %p179 = scmp.eq.s32.totalorder %s36, 0
      %p180 = por %p178, %p179
      %p181 = scmp.ne.s32.totalorder %s173, %s175
      %p182 = scmp.eq.s32.totalorder %s41, 1
      %p183 = por %p181, %p182
      %p184 = scmp.ne.s32.totalorder %s175, %s176
      %p185 = scmp.eq.s32.totalorder %s41, 0
      %p186 = por %p184, %p185
      %p187 = scmp.ne.s32.totalorder %s175, %s176
      %p188 = scmp.eq.s32.totalorder %s42, 1
      %p189 = por %p187, %p188
      %p191 = scmp.ne.s32.totalorder %s176, %s190
      %p192 = scmp.eq.s32.totalorder %s42, 0
      %p193 = por %p191, %p192
      %s195 = sadd.s32 %s194, 1
      %p198 = scmp.eq.s32.totalorder %s36, 1
      %p199 = scmp.ne.s32.totalorder %s194, %s196
      %p200 = scmp.eq.s32.totalorder %s36, 0
      %p201 = por %p199, %p200
      %p202 = scmp.ne.s32.totalorder %s194, %s196
      %p203 = scmp.eq.s32.totalorder %s41, 1
      %p204 = por %p202, %p203
      %p205 = scmp.ne.s32.totalorder %s196, %s197
      %p206 = scmp.eq.s32.totalorder %s41, 0
      %p207 = por %p205, %p206
      %p208 = scmp.ne.s32.totalorder %s196, %s197
      %p209 = scmp.eq.s32.totalorder %s42, 1
      %p210 = por %p208, %p209
      %p212 = scmp.ne.s32.totalorder %s197, %s211
      %p213 = scmp.eq.s32.totalorder %s42, 0
      %p214 = por %p212, %p213
      %s216 = sadd.s32 %s215, 1
      %p219 = scmp.eq.s32.totalorder %s36, 1
      %p220 = scmp.ne.s32.totalorder %s215, %s217
      %p221 = scmp.eq.s32.totalorder %s36, 0
      %p222 = por %p220, %p221
      %p223 = scmp.ne.s32.totalorder %s215, %s217
      %p224 = scmp.eq.s32.totalorder %s41, 1
      %p225 = por %p223, %p224
      %p226 = scmp.ne.s32.totalorder %s217, %s218
      %p227 = scmp.eq.s32.totalorder %s41, 0
      %p228 = por %p226, %p227
      %p229 = scmp.ne.s32.totalorder %s217, %s218
      %p230 = scmp.eq.s32.totalorder %s42, 1
      %p231 = por %p229, %p230
      %p233 = scmp.ne.s32.totalorder %s218, %s232
      %p234 = scmp.eq.s32.totalorder %s42, 0
      %p235 = por %p233, %p234
      %s237 = sadd.s32 %s236, 1
      %p240 = scmp.eq.s32.totalorder %s36, 1
      %p241 = scmp.ne.s32.totalorder %s236, %s238
      %p242 = scmp.eq.s32.totalorder %s36, 0
      %p243 = por %p241, %p242
      %p244 = scmp.ne.s32.totalorder %s236, %s238
      %p245 = scmp.eq.s32.totalorder %s41, 1
      %p246 = por %p244, %p245
      %p247 = scmp.ne.s32.totalorder %s238, %s239
      %p248 = scmp.eq.s32.totalorder %s41, 0
      %p249 = por %p247, %p248
      %p250 = scmp.ne.s32.totalorder %s238, %s239
      %p251 = scmp.eq.s32.totalorder %s42, 1
      %p252 = por %p250, %p251
      %p254 = scmp.ne.s32.totalorder %s239, %s253
      %p255 = scmp.eq.s32.totalorder %s42, 0
      %p256 = por %p254, %p255
      %s258 = sadd.s32 %s257, 1
      %p261 = scmp.eq.s32.totalorder %s36, 1
      %p262 = scmp.ne.s32.totalorder %s257, %s259
      %p263 = scmp.eq.s32.totalorder %s36, 0
      %p264 = por %p262, %p263
      %p265 = scmp.ne.s32.totalorder %s257, %s259
      %p266 = scmp.eq.s32.totalorder %s41, 1
      %p267 = por %p265, %p266
      %p268 = scmp.ne.s32.totalorder %s259, %s260
      %p269 = scmp.eq.s32.totalorder %s41, 0
      %p270 = por %p268, %p269
      %p271 = scmp.ne.s32.totalorder %s259, %s260
      %p272 = scmp.eq.s32.totalorder %s42, 1
      %p273 = por %p271, %p272
      %p275 = scmp.ne.s32.totalorder %s260, %s274
      %p276 = scmp.eq.s32.totalorder %s42, 0
      %p277 = por %p275, %p276
      %s279 = sadd.s32 %s278, 1
      %p282 = scmp.eq.s32.totalorder %s36, 1
      %p283 = scmp.ne.s32.totalorder %s278, %s280
      %p284 = scmp.eq.s32.totalorder %s36, 0
      %p285 = por %p283, %p284
      %p286 = scmp.ne.s32.totalorder %s278, %s280
      %p287 = scmp.eq.s32.totalorder %s41, 1
      %p288 = por %p286, %p287
      %p289 = scmp.ne.s32.totalorder %s280, %s281
      %p290 = scmp.eq.s32.totalorder %s41, 0
      %p291 = por %p289, %p290
      %p292 = scmp.ne.s32.totalorder %s280, %s281
      %p293 = scmp.eq.s32.totalorder %s42, 1
      %p294 = por %p292, %p293
      %p296 = scmp.ne.s32.totalorder %s281, %s295
      %p297 = scmp.eq.s32.totalorder %s42, 0
      %p298 = por %p296, %p297
      %s300 = sadd.s32 %s299, 1
      %p303 = scmp.eq.s32.totalorder %s36, 1
      %p304 = scmp.ne.s32.totalorder %s299, %s301
      %p305 = scmp.eq.s32.totalorder %s36, 0
      %p306 = por %p304, %p305
      %p307 = scmp.ne.s32.totalorder %s299, %s301
      %p308 = scmp.eq.s32.totalorder %s41, 1
      %p309 = por %p307, %p308
      %p310 = scmp.ne.s32.totalorder %s301, %s302
      %p311 = scmp.eq.s32.totalorder %s41, 0
      %p312 = por %p310, %p311
      %p313 = scmp.ne.s32.totalorder %s301, %s302
      %p314 = scmp.eq.s32.totalorder %s42, 1
      %p315 = por %p313, %p314
      %p317 = scmp.ne.s32.totalorder %s302, %s316
      %p318 = scmp.eq.s32.totalorder %s42, 0
      %p319 = por %p317, %p318
      %s321 = sadd.s32 %s320, 1
      %p324 = scmp.eq.s32.totalorder %s36, 1
      %p325 = scmp.ne.s32.totalorder %s320, %s322
      %p326 = scmp.eq.s32.totalorder %s36, 0
      %p327 = por %p325, %p326
      %p328 = scmp.ne.s32.totalorder %s320, %s322
      %p329 = scmp.eq.s32.totalorder %s41, 1
      %p330 = por %p328, %p329
      %p331 = scmp.ne.s32.totalorder %s322, %s323
      %p332 = scmp.eq.s32.totalorder %s41, 0
      %p333 = por %p331, %p332
      %p334 = scmp.ne.s32.totalorder %s322, %s323
      %p335 = scmp.eq.s32.totalorder %s42, 1
      %p336 = por %p334, %p335
      %p338 = scmp.ne.s32.totalorder %s323, %s337
      %p339 = scmp.eq.s32.totalorder %s42, 0
      %p340 = por %p338, %p339
      %s342 = sadd.s32 %s341, 1
      %p345 = scmp.eq.s32.totalorder %s36, 1
      %p346 = scmp.ne.s32.totalorder %s341, %s343
      %p347 = scmp.eq.s32.totalorder %s36, 0
      %p348 = por %p346, %p347
      %p349 = scmp.ne.s32.totalorder %s341, %s343
      %p350 = scmp.eq.s32.totalorder %s41, 1
      %p351 = por %p349, %p350
      %p352 = scmp.ne.s32.totalorder %s343, %s344
      %p353 = scmp.eq.s32.totalorder %s41, 0
      %p354 = por %p352, %p353
      %p355 = scmp.ne.s32.totalorder %s343, %s344
      %p356 = scmp.eq.s32.totalorder %s42, 1
      %p357 = por %p355, %p356
      %p359 = scmp.ne.s32.totalorder %s344, %s358
      %p360 = scmp.eq.s32.totalorder %s42, 0
      %p361 = por %p359, %p360
      %s363 = sadd.s32 %s362, 1
      %p366 = scmp.eq.s32.totalorder %s36, 1
      %p367 = scmp.ne.s32.totalorder %s362, %s364
      %p368 = scmp.eq.s32.totalorder %s36, 0
      %p369 = por %p367, %p368
      %p370 = scmp.ne.s32.totalorder %s362, %s364
      %p371 = scmp.eq.s32.totalorder %s41, 1
      %p372 = por %p370, %p371
      %p373 = scmp.ne.s32.totalorder %s364, %s365
      %p374 = scmp.eq.s32.totalorder %s41, 0
      %p375 = por %p373, %p374
      %p376 = scmp.ne.s32.totalorder %s364, %s365
      %p377 = scmp.eq.s32.totalorder %s42, 1
      %p378 = por %p376, %p377
      %p380 = scmp.ne.s32.totalorder %s365, %s379
      %p381 = scmp.eq.s32.totalorder %s42, 0
      %p382 = por %p380, %p381
      %s383 = ssub.s32 %s43, %s55
      %s384 = ssub.s32 %s44, %s51
      %s385 = sor.u32 %s383, %s384
      %p386 = scmp.eq.s32.totalorder %s385, 0
      %s388 = sadd.s32 %s387, 1
      %s389 = scalar_select %p386, %s387, %s388
      %p392 = pneg %p386
      %p393 = scmp.eq.s32.totalorder %s36, 1
      %p394 = por %p392, %p393
      %p395 = scmp.ne.s32.totalorder %s387, %s390
      %p396 = scmp.eq.s32.totalorder %s36, 0
      %p397 = por %p395, %p396
      %p398 = scmp.ne.s32.totalorder %s387, %s390
      %p399 = scmp.eq.s32.totalorder %s41, 1
      %p400 = por %p398, %p399
      %p401 = scmp.ne.s32.totalorder %s390, %s391
      %p402 = scmp.eq.s32.totalorder %s41, 0
      %p403 = por %p401, %p402
      %p404 = scmp.ne.s32.totalorder %s390, %s391
      %p405 = scmp.eq.s32.totalorder %s42, 1
      %p406 = por %p404, %p405
      %p408 = scmp.ne.s32.totalorder %s391, %s407
      %p409 = scmp.eq.s32.totalorder %s42, 0
      %p410 = por %p408, %p409
      %p411 = scmp.le.s32.totalorder 1, %s36
      %p412 = scmp.lt.s32.totalorder %s36, 3
      %p413 = pnand %p411, %p412
      %p414 = pneg %p413
      // Predicated region
      $region9: #{tpu_custom_call.1} parent=5 // pred_check
        _
      $region10: #{tpu_custom_call.1} parent=5 // pred_check_branch
        %416 = sbr.rel (%p413) target = $region12
      $region11: #{tpu_custom_call.1} parent=5 // pred_region
        %s417 = ssub.s32 %s36, 1
        // Predicated region
        $region13: #{tpu_custom_call.1} parent=11 // pred_check
          %p418 = pneg %p123
        $region14: #{tpu_custom_call.1} parent=11 // pred_check_branch
          %420 = sbr.rel (%p418) target = $region16
        $region15: #{tpu_custom_call.1} parent=11 // pred_region
          %s422 = ssub.s32 16, 16
          %423 = vsyncadd [#allocation8], %s422
          %s425 = sshll.u32 [#allocation9], 4
          %s426 = int_to_ptr.vmem [resolvable:$true] %s425
          %428 = dma.hbm_to_vmem [thread:$0]  %s2, 16, %s426, [#allocation8]
        $region16: #{tpu_custom_call.1} parent=11 // pred_fallthru
          _
        // Predicated region
        $region17: #{tpu_custom_call.1} parent=11 // pred_check
          %p429 = pneg %p144
        $region18: #{tpu_custom_call.1} parent=11 // pred_check_branch
          %431 = sbr.rel (%p429) target = $region20
        $region19: #{tpu_custom_call.1} parent=11 // pred_region
          %s433 = ssub.s32 16, 16
          %434 = vsyncadd [#allocation11], %s433
          %s436 = sshll.u32 [#allocation10], 4
          %s437 = int_to_ptr.vmem [resolvable:$true] %s436
          %439 = dma.hbm_to_vmem [thread:$0]  %s3, 16, %s437, [#allocation11]
        $region20: #{tpu_custom_call.1} parent=11 // pred_fallthru
          _
        // Predicated region
        $region21: #{tpu_custom_call.1} parent=11 // pred_check
          %p440 = pneg %p165
        $region22: #{tpu_custom_call.1} parent=11 // pred_check_branch
          %442 = sbr.rel (%p440) target = $region24
        $region23: #{tpu_custom_call.1} parent=11 // pred_region
          %s444 = ssub.s32 256, 256
          %445 = vsyncadd [#allocation11], %s444
          %s446 = sshll.u32 [#allocation12], 4
          %s447 = int_to_ptr.vmem [resolvable:$true] %s446
          %452 = dma.hbm_to_vmem [thread:$0]  %s4, 256, %s447, [#allocation11], 64, 64, 4
        $region24: #{tpu_custom_call.1} parent=11 // pred_fallthru
          _
        // Predicated region
        $region25: #{tpu_custom_call.1} parent=11 // pred_check
          %p453 = pneg %p186
        $region26: #{tpu_custom_call.1} parent=11 // pred_check_branch
          %455 = sbr.rel (%p453) target = $region28
        $region27: #{tpu_custom_call.1} parent=11 // pred_region
          %s457 = ssub.s32 256, 256
          %458 = vsyncadd [#allocation14], %s457
          %s459 = sshll.u32 [#allocation13], 4
          %s460 = int_to_ptr.vmem [resolvable:$true] %s459
          %465 = dma.hbm_to_vmem [thread:$0]  %s5, 256, %s460, [#allocation14], 64, 64, 4
        $region28: #{tpu_custom_call.1} parent=11 // pred_fallthru
          _
        // Predicated region
        $region29: #{tpu_custom_call.1} parent=11 // pred_check
          %p466 = pneg %p207
        $region30: #{tpu_custom_call.1} parent=11 // pred_check_branch
          %468 = sbr.rel (%p466) target = $region32
        $region31: #{tpu_custom_call.1} parent=11 // pred_region
          %s470 = ssub.s32 256, 256
          %471 = vsyncadd [#allocation14], %s470
          %s472 = sshll.u32 [#allocation15], 4
          %s473 = int_to_ptr.vmem [resolvable:$true] %s472
          %478 = dma.hbm_to_vmem [thread:$0]  %s6, 256, %s473, [#allocation14], 64, 64, 4
        $region32: #{tpu_custom_call.1} parent=11 // pred_fallthru
          _
        // Predicated region
        $region33: #{tpu_custom_call.1} parent=11 // pred_check
          %p479 = pneg %p228
        $region34: #{tpu_custom_call.1} parent=11 // pred_check_branch
          %481 = sbr.rel (%p479) target = $region36
        $region35: #{tpu_custom_call.1} parent=11 // pred_region
          %s483 = ssub.s32 256, 256
          %484 = vsyncadd [#allocation17], %s483
          %s485 = sshll.u32 [#allocation16], 4
          %s486 = int_to_ptr.vmem [resolvable:$true] %s485
          %491 = dma.hbm_to_vmem [thread:$0]  %s7, 256, %s486, [#allocation17], 64, 64, 4
        $region36: #{tpu_custom_call.1} parent=11 // pred_fallthru
          _
        // Predicated region
        $region37: #{tpu_custom_call.1} parent=11 // pred_check
          %p492 = pneg %p249
        $region38: #{tpu_custom_call.1} parent=11 // pred_check_branch
          %494 = sbr.rel (%p492) target = $region40
        $region39: #{tpu_custom_call.1} parent=11 // pred_region
          %s496 = ssub.s32 16, 16
          %497 = vsyncadd [#allocation17], %s496
          %s499 = sshll.u32 [#allocation18], 4
          %s500 = int_to_ptr.vmem [resolvable:$true] %s499
          %502 = dma.hbm_to_vmem [thread:$0]  %s8, 16, %s500, [#allocation17]
        $region40: #{tpu_custom_call.1} parent=11 // pred_fallthru
          _
        // Predicated region
        $region41: #{tpu_custom_call.1} parent=11 // pred_check
          %p503 = pneg %p270
        $region42: #{tpu_custom_call.1} parent=11 // pred_check_branch
          %505 = sbr.rel (%p503) target = $region44
        $region43: #{tpu_custom_call.1} parent=11 // pred_region
          %s507 = ssub.s32 16, 16
          %508 = vsyncadd [#allocation20], %s507
          %s510 = sshll.u32 [#allocation19], 4
          %s511 = int_to_ptr.vmem [resolvable:$true] %s510
          %513 = dma.hbm_to_vmem [thread:$0]  %s9, 16, %s511, [#allocation20]
        $region44: #{tpu_custom_call.1} parent=11 // pred_fallthru
          _
        // Predicated region
        $region45: #{tpu_custom_call.1} parent=11 // pred_check
          %p514 = pneg %p291
        $region46: #{tpu_custom_call.1} parent=11 // pred_check_branch
          %516 = sbr.rel (%p514) target = $region48
        $region47: #{tpu_custom_call.1} parent=11 // pred_region
          %s518 = ssub.s32 16, 16
          %519 = vsyncadd [#allocation20], %s518
          %s521 = sshll.u32 [#allocation21], 4
          %s522 = int_to_ptr.vmem [resolvable:$true] %s521
          %524 = dma.hbm_to_vmem [thread:$0]  %s10, 16, %s522, [#allocation20]
        $region48: #{tpu_custom_call.1} parent=11 // pred_fallthru
          _
        // Predicated region
        $region49: #{tpu_custom_call.1} parent=11 // pred_check
          %p525 = pneg %p312
        $region50: #{tpu_custom_call.1} parent=11 // pred_check_branch
          %527 = sbr.rel (%p525) target = $region52
        $region51: #{tpu_custom_call.1} parent=11 // pred_region
          %s529 = ssub.s32 256, 256
          %530 = vsyncadd [#allocation23], %s529
          %s531 = sshll.u32 [#allocation22], 4
          %s532 = int_to_ptr.vmem [resolvable:$true] %s531
          %537 = dma.hbm_to_vmem [thread:$0]  %s11, 256, %s532, [#allocation23], 64, 64, 4
        $region52: #{tpu_custom_call.1} parent=11 // pred_fallthru
          _
        // Predicated region
        $region53: #{tpu_custom_call.1} parent=11 // pred_check
          %p538 = pneg %p333
        $region54: #{tpu_custom_call.1} parent=11 // pred_check_branch
          %540 = sbr.rel (%p538) target = $region56
        $region55: #{tpu_custom_call.1} parent=11 // pred_region
          %s542 = ssub.s32 16, 16
          %543 = vsyncadd [#allocation23], %s542
          %s545 = sshll.u32 [#allocation24], 4
          %s546 = int_to_ptr.vmem [resolvable:$true] %s545
          %548 = dma.hbm_to_vmem [thread:$0]  %s12, 16, %s546, [#allocation23]
        $region56: #{tpu_custom_call.1} parent=11 // pred_fallthru
          _
        // Predicated region
        $region57: #{tpu_custom_call.1} parent=11 // pred_check
          %p549 = pneg %p354
        $region58: #{tpu_custom_call.1} parent=11 // pred_check_branch
          %551 = sbr.rel (%p549) target = $region60
        $region59: #{tpu_custom_call.1} parent=11 // pred_region
          %s553 = ssub.s32 1024, 1024
          %554 = vsyncadd [#allocation26], %s553
          %s555 = sshll.u32 [#allocation25], 4
          %s556 = int_to_ptr.vmem [resolvable:$true] %s555
          %561 = dma.hbm_to_vmem [thread:$0]  %s13, 1024, %s556, [#allocation26], 64, 64, 4
        $region60: #{tpu_custom_call.1} parent=11 // pred_fallthru
          _
        // Predicated region
        $region61: #{tpu_custom_call.1} parent=11 // pred_check
          %p562 = pneg %p375
        $region62: #{tpu_custom_call.1} parent=11 // pred_check_branch
          %564 = sbr.rel (%p562) target = $region64
        $region63: #{tpu_custom_call.1} parent=11 // pred_region
          %s566 = ssub.s32 16, 16
          %567 = vsyncadd [#allocation26], %s566
          %s569 = sshll.u32 [#allocation27], 4
          %s570 = int_to_ptr.vmem [resolvable:$true] %s569
          %572 = dma.hbm_to_vmem [thread:$0]  %s14, 16, %s570, [#allocation26]
        $region64: #{tpu_custom_call.1} parent=11 // pred_fallthru
          _
      $region12: #{tpu_custom_call.1} parent=5 // pred_fallthru
        _
      %p573 = scmp.lt.s32.totalorder %s36, 2
      // Predicated region
      $region65: #{tpu_custom_call.1} parent=5 // pred_check
        %p574 = pneg %p573
      $region66: #{tpu_custom_call.1} parent=5 // pred_check_branch
        %576 = sbr.rel (%p574) target = $region68
      $region67: #{tpu_custom_call.1} parent=5 // pred_region
        // Predicated region
        $region69: #{tpu_custom_call.1} parent=67 // pred_check
          %p577 = pneg %p70
        $region70: #{tpu_custom_call.1} parent=67 // pred_check_branch
          %579 = sbr.rel (%p577) target = $region72
        $region71: #{tpu_custom_call.1} parent=67 // pred_region
          %s580 = sand.u32 %s60, 1
          %s581 = scalar_lea.sflag [#allocation5], %s580
          %s582 = sand.u32 %s60, 1
          %s583 = smul.addr %s582, 8
          %s584 = scalar_lea.vmem [#allocation4], %s583
          %s586 = ssub.s32 128, 128
          %587 = vsyncadd %s581, %s586
          %s588 = sadd.s32 %s44, %s43
          %s589 = smul.addr %s588, 128
          %s590 = scalar_lea.hbm %s0, %s589
          %s592 = sshll.u32 %s584, 4
          %s593 = int_to_ptr.vmem [resolvable:$true] %s592
          %595 = dma.hbm_to_vmem [thread:$0]  %s590, 128, %s593, %s581
        $region72: #{tpu_custom_call.1} parent=67 // pred_fallthru
          _
        // Predicated region
        $region73: #{tpu_custom_call.1} parent=67 // pred_check
          %p596 = pneg %p96
        $region74: #{tpu_custom_call.1} parent=67 // pred_check_branch
          %598 = sbr.rel (%p596) target = $region76
        $region75: #{tpu_custom_call.1} parent=67 // pred_region
          %s599 = sand.u32 %s36, 1
          %s600 = scalar_lea.sflag [#allocation8], %s599
          %s601 = sand.u32 %s86, 1
          %s602 = smul.addr %s601, 8
          %s603 = scalar_lea.vmem [#allocation7], %s602
          %s605 = ssub.s32 128, 128
          %606 = vsyncadd %s600, %s605
          %s607 = smul.addr %s43, 128
          %s608 = scalar_lea.hbm %s1, %s607
          %s610 = sshll.u32 %s603, 4
          %s611 = int_to_ptr.vmem [resolvable:$true] %s610
          %613 = dma.hbm_to_vmem [thread:$0]  %s608, 128, %s611, %s600
        $region76: #{tpu_custom_call.1} parent=67 // pred_fallthru
          _
      $region68: #{tpu_custom_call.1} parent=5 // pred_fallthru
        _
      %p614 = scmp.le.s32.totalorder 1, %s36
      %p615 = scmp.lt.s32.totalorder %s36, 3
      %p616 = pnand %p614, %p615
      %p617 = pneg %p616
      // Predicated region
      $region77: #{tpu_custom_call.1} parent=5 // pred_check
        _
      $region78: #{tpu_custom_call.1} parent=5 // pred_check_branch
        %619 = sbr.rel (%p616) target = $region80
      $region79: #{tpu_custom_call.1} parent=5 // pred_region
        %s620 = ssub.s32 %s36, 1
        %s621 = sand.u32 %s63, 1
        %s622 = scalar_lea.sflag [#allocation5], %s621
        %s623 = sand.u32 %s63, 1
        %s624 = smul.addr %s623, 8
        %s625 = scalar_lea.vmem [#allocation4], %s624
        // Predicated region
        $region81: #{tpu_custom_call.1} parent=79 // pred_check
          %p626 = pneg %p76
        $region82: #{tpu_custom_call.1} parent=79 // pred_check_branch
          %628 = sbr.rel (%p626) target = $region84
        $region83: #{tpu_custom_call.1} parent=79 // pred_region
          %629 = dma.done %s622, 128
        $region84: #{tpu_custom_call.1} parent=79 // pred_fallthru
          _
        %s630 = sand.u32 %s41, 1
        %s631 = scalar_lea.sflag [#allocation8], %s630
        %s632 = sand.u32 %s89, 1
        %s633 = smul.addr %s632, 8
        %s634 = scalar_lea.vmem [#allocation7], %s633
        // Predicated region
        $region85: #{tpu_custom_call.1} parent=79 // pred_check
          %p635 = pneg %p102
        $region86: #{tpu_custom_call.1} parent=79 // pred_check_branch
          %637 = sbr.rel (%p635) target = $region88
        $region87: #{tpu_custom_call.1} parent=79 // pred_region
          %638 = dma.done %s631, 128
        $region88: #{tpu_custom_call.1} parent=79 // pred_fallthru
          _
        // Predicated region
        $region89: #{tpu_custom_call.1} parent=79 // pred_check
          %p639 = pneg %p123
        $region90: #{tpu_custom_call.1} parent=79 // pred_check_branch
          %641 = sbr.rel (%p639) target = $region92
        $region91: #{tpu_custom_call.1} parent=79 // pred_region
          %642 = dma.done [#allocation8], 16
        $region92: #{tpu_custom_call.1} parent=79 // pred_fallthru
          _
        // Predicated region
        $region93: #{tpu_custom_call.1} parent=79 // pred_check
          %p643 = pneg %p144
        $region94: #{tpu_custom_call.1} parent=79 // pred_check_branch
          %645 = sbr.rel (%p643) target = $region96
        $region95: #{tpu_custom_call.1} parent=79 // pred_region
          %646 = dma.done [#allocation11], 16
        $region96: #{tpu_custom_call.1} parent=79 // pred_fallthru
          _
        // Predicated region
        $region97: #{tpu_custom_call.1} parent=79 // pred_check
          %p647 = pneg %p165
        $region98: #{tpu_custom_call.1} parent=79 // pred_check_branch
          %649 = sbr.rel (%p647) target = $region100
        $region99: #{tpu_custom_call.1} parent=79 // pred_region
          %650 = dma.done [#allocation11], 256
        $region100: #{tpu_custom_call.1} parent=79 // pred_fallthru
          _
        // Predicated region
        $region101: #{tpu_custom_call.1} parent=79 // pred_check
          %p651 = pneg %p186
        $region102: #{tpu_custom_call.1} parent=79 // pred_check_branch
          %653 = sbr.rel (%p651) target = $region104
        $region103: #{tpu_custom_call.1} parent=79 // pred_region
          %654 = dma.done [#allocation14], 256
        $region104: #{tpu_custom_call.1} parent=79 // pred_fallthru
          _
        // Predicated region
        $region105: #{tpu_custom_call.1} parent=79 // pred_check
          %p655 = pneg %p207
        $region106: #{tpu_custom_call.1} parent=79 // pred_check_branch
          %657 = sbr.rel (%p655) target = $region108
        $region107: #{tpu_custom_call.1} parent=79 // pred_region
          %658 = dma.done [#allocation14], 256
        $region108: #{tpu_custom_call.1} parent=79 // pred_fallthru
          _
        // Predicated region
        $region109: #{tpu_custom_call.1} parent=79 // pred_check
          %p659 = pneg %p228
        $region110: #{tpu_custom_call.1} parent=79 // pred_check_branch
          %661 = sbr.rel (%p659) target = $region112
        $region111: #{tpu_custom_call.1} parent=79 // pred_region
          %662 = dma.done [#allocation17], 256
        $region112: #{tpu_custom_call.1} parent=79 // pred_fallthru
          _
        // Predicated region
        $region113: #{tpu_custom_call.1} parent=79 // pred_check
          %p663 = pneg %p249
        $region114: #{tpu_custom_call.1} parent=79 // pred_check_branch
          %665 = sbr.rel (%p663) target = $region116
        $region115: #{tpu_custom_call.1} parent=79 // pred_region
          %666 = dma.done [#allocation17], 16
        $region116: #{tpu_custom_call.1} parent=79 // pred_fallthru
          _
        // Predicated region
        $region117: #{tpu_custom_call.1} parent=79 // pred_check
          %p667 = pneg %p270
        $region118: #{tpu_custom_call.1} parent=79 // pred_check_branch
          %669 = sbr.rel (%p667) target = $region120
        $region119: #{tpu_custom_call.1} parent=79 // pred_region
          %670 = dma.done [#allocation20], 16
        $region120: #{tpu_custom_call.1} parent=79 // pred_fallthru
          _
        // Predicated region
        $region121: #{tpu_custom_call.1} parent=79 // pred_check
          %p671 = pneg %p291
        $region122: #{tpu_custom_call.1} parent=79 // pred_check_branch
          %673 = sbr.rel (%p671) target = $region124
        $region123: #{tpu_custom_call.1} parent=79 // pred_region
          %674 = dma.done [#allocation20], 16
        $region124: #{tpu_custom_call.1} parent=79 // pred_fallthru
          _
        // Predicated region
        $region125: #{tpu_custom_call.1} parent=79 // pred_check
          %p675 = pneg %p312
        $region126: #{tpu_custom_call.1} parent=79 // pred_check_branch
          %677 = sbr.rel (%p675) target = $region128
        $region127: #{tpu_custom_call.1} parent=79 // pred_region
          %678 = dma.done [#allocation23], 256
        $region128: #{tpu_custom_call.1} parent=79 // pred_fallthru
          _
        // Predicated region
        $region129: #{tpu_custom_call.1} parent=79 // pred_check
          %p679 = pneg %p333
        $region130: #{tpu_custom_call.1} parent=79 // pred_check_branch
          %681 = sbr.rel (%p679) target = $region132
        $region131: #{tpu_custom_call.1} parent=79 // pred_region
          %682 = dma.done [#allocation23], 16
        $region132: #{tpu_custom_call.1} parent=79 // pred_fallthru
          _
        // Predicated region
        $region133: #{tpu_custom_call.1} parent=79 // pred_check
          %p683 = pneg %p354
        $region134: #{tpu_custom_call.1} parent=79 // pred_check_branch
          %685 = sbr.rel (%p683) target = $region136
        $region135: #{tpu_custom_call.1} parent=79 // pred_region
          %686 = dma.done [#allocation26], 1024
        $region136: #{tpu_custom_call.1} parent=79 // pred_fallthru
          _
        // Predicated region
        $region137: #{tpu_custom_call.1} parent=79 // pred_check
          %p687 = pneg %p375
        $region138: #{tpu_custom_call.1} parent=79 // pred_check_branch
          %689 = sbr.rel (%p687) target = $region140
        $region139: #{tpu_custom_call.1} parent=79 // pred_region
          %690 = dma.done [#allocation26], 16
        $region140: #{tpu_custom_call.1} parent=79 // pred_fallthru
          _
        %s691 = sand.u32 %s63, 1
        %s692 = scalar_lea.sflag [#allocation5], %s691
        %s693 = sand.u32 %s63, 1
        %s694 = smul.addr %s693, 8
        %s695 = scalar_lea.vmem [#allocation4], %s694
        %p696 = pneg %p76
        %p697 = pneg %p73
        %s698 = sand.u32 %s41, 1
        %s699 = scalar_lea.sflag [#allocation8], %s698
        %s700 = sand.u32 %s89, 1
        %s701 = smul.addr %s700, 8
        %s702 = scalar_lea.vmem [#allocation7], %s701
        %p703 = pneg %p102
        %p704 = pneg %p99
        %p705 = pneg %p123
        %p706 = pneg %p120
        %p707 = pneg %p144
        %p708 = pneg %p141
        %p709 = pneg %p165
        %p710 = pneg %p162
        %p711 = pneg %p186
        %p712 = pneg %p183
        %p713 = pneg %p207
        %p714 = pneg %p204
        %p715 = pneg %p228
        %p716 = pneg %p225
        %p717 = pneg %p249
        %p718 = pneg %p246
        %p719 = pneg %p270
        %p720 = pneg %p267
        %p721 = pneg %p291
        %p722 = pneg %p288
        %p723 = pneg %p312
        %p724 = pneg %p309
        %p725 = pneg %p333
        %p726 = pneg %p330
        %p727 = pneg %p354
        %p728 = pneg %p351
        %p729 = pneg %p375
        %p730 = pneg %p372
        %p731 = pneg %p403
        %p732 = pneg %p400
        %s733 = sand.u32 %s390, 1
        %s734 = scalar_lea.sflag [#allocation6], %s733
        %s735 = sand.u32 %s390, 1
        %s736 = smul.addr %s735, 8
        %s737 = scalar_lea.vmem [#allocation28], %s736
        %p739 = scmp.eq.s32.totalorder %s46, 0
        // Predicated region
        $region141: #{tpu_custom_call.1} parent=79 // pred_check
          %p740 = pneg %p739
        $region142: #{tpu_custom_call.1} parent=79 // pred_check_branch
          %742 = sbr.rel (%p740) target = $region144
        $region143: #{tpu_custom_call.1} parent=79 // pred_region
          %v743 = vld [vmem:[%s634] sm:$0xff]
          %v744 = vld [vmem:[#allocation9] sm:$0x1]
          %v745 = vld [vmem:[#allocation10] sm:$0x1]
          %vm746 = vcmask 261120
          %v747 = vsel %vm746, %v743, 0.0
          %748 = vadd.xlane.f32.xlu0 %v747
          %v749 = vpop.xlane.xlu0 %748
          %v750 = vrcp.pop 32.0
          %v751 = vmul.f32 %v749, %v750
          %v752 = vsub.f32 %v743, %v751
          %v753 = vmul.f32 %v752, %v752
          %v754 = vsel %vm746, %v753, 0.0
          %755 = vadd.xlane.f32.xlu0 %v754
          %v756 = vpop.xlane.xlu0 %755
          %v757 = vmul.f32 %v756, %v750
          %v758 = vadd.f32 %v757, 1e-05
          %v759 = vrsqrt.pop %v758
          %v760 = vmul.f32 %v752, %v759
          %v762 = vlaneseq
          %v763 = vshrl.u32 %v762, 7
          %v764 = vsub.s32 0, %v763
          %v765 = vrot.slane %v744, %v764
          %v767 = vmul.f32 %v760, %v765
          %v769 = vlaneseq
          %v770 = vshrl.u32 %v769, 7
          %v771 = vsub.s32 0, %v770
          %v772 = vrot.slane %v745, %v771
          %v774 = vadd.f32 %v767, %v772
          %v775 = vpack.c.bf16 %v774, %v774
          %v776 = vld [vmem:[#allocation13] sm:$0xf]
          %v777 = vld [vmem:[#allocation13 + $0x4] sm:$0xf]
          %v778 = vld [vmem:[#allocation13 + $0x8] sm:$0xf]
          %v779 = vld [vmem:[#allocation13 + $0xc] sm:$0xf]
          %v784 = vunpack.c.l.b16 %v776
          %v785 = vunpack.c.l.b16 %v777
          %v786 = vunpack.c.l.b16 %v778
          %v787 = vunpack.c.l.b16 %v779
          %v788 = vpack.c.b16 %v785, %v784
          %v789 = vpack.c.b16 %v787, %v786
          %v793 = vsel %vm746, %v775, 0
          %795 = vmatprep.subr.bf16.mxu0 0
          %796 = vmatpush1.bf16.msra.mxu0 %v788
          %797 = vmatprep.subr.bf16.mxu0 0
          %798 = vmatpush1.bf16.msra.mxu0 %v789
          %799 = vmatprep.subr.bf16.mxu0 0
          %800 = vmatpush1.bf16.msra.mxu0 0
          %801 = vmatprep.subr.bf16.mxu0 0
          %802 = vmatpush1.bf16.msra.mxu0 0
          %803 = vmatprep.subr.bf16.mxu0 0
          %804 = vmatpush1.bf16.msra.mxu0 0
          %805 = vmatprep.subr.bf16.mxu0 0
          %806 = vmatpush1.bf16.msra.mxu0 0
          %807 = vmatprep.subr.bf16.mxu0 0
          %808 = vmatpush1.bf16.msra.mxu0 0
          %809 = vmatprep.subr.bf16.mxu0 0
          %810 = vmatpush1.bf16.msra.mxu0 0
          %811 = vmatprep.subr.bf16.mxu0 0
          %812 = vmatpush1.bf16.msra.mxu0 0
          %813 = vmatprep.subr.bf16.mxu0 0
          %814 = vmatpush1.bf16.msra.mxu0 0
          %815 = vmatprep.subr.bf16.mxu0 0
          %816 = vmatpush1.bf16.msra.mxu0 0
          %817 = vmatprep.subr.bf16.mxu0 0
          %818 = vmatpush1.bf16.msra.mxu0 0
          %819 = vmatprep.subr.bf16.mxu0 0
          %820 = vmatpush1.bf16.msra.mxu0 0
          %821 = vmatprep.subr.bf16.mxu0 0
          %822 = vmatpush1.bf16.msra.mxu0 0
          %823 = vmatprep.subr.bf16.mxu0 0
          %824 = vmatpush1.bf16.msra.mxu0 0
          %825 = vmatprep.subr.bf16.mxu0 0
          %826 = vmatpush1.bf16.msra.mxu0 0
          %827 = vmatprep.mubr.bf16.mxu0 0
          %828 = vmatmul.mubr.bf16.gmra.mrb[0].mxu0 %v793
          %v829 = vpop.f32.mrb[0].mxu0
          %v830 = vadd.f32 0.0, %v829
          %v831 = vpop.f32.mrb[0].mxu0
          %v832 = vpop.f32.mrb[0].mxu0
          %v833 = vpop.f32.mrb[0].mxu0
          %834 = vdwg.mxu0
          %v835 = vpack.c.bf16 %v830, %v830
          %vm836 = vcmask 257024
          %837 = vst.msk [vmem:[#allocation2] sm:$0xf] %vm836, %v835
          %v838 = vld [vmem:[#allocation15] sm:$0xf]
          %v839 = vld [vmem:[#allocation15 + $0x4] sm:$0xf]
          %v840 = vld [vmem:[#allocation15 + $0x8] sm:$0xf]
          %v841 = vld [vmem:[#allocation15 + $0xc] sm:$0xf]
          %v846 = vunpack.c.l.b16 %v838
          %v847 = vunpack.c.l.b16 %v839
          %v848 = vunpack.c.l.b16 %v840
          %v849 = vunpack.c.l.b16 %v841
          %v850 = vpack.c.b16 %v847, %v846
          %v851 = vpack.c.b16 %v849, %v848
          %854 = vmatprep.subr.bf16.mxu0 0
          %855 = vmatpush1.bf16.msra.mxu0 %v850
          %856 = vmatprep.subr.bf16.mxu0 0
          %857 = vmatpush1.bf16.msra.mxu0 %v851
          %858 = vmatprep.subr.bf16.mxu0 0
          %859 = vmatpush1.bf16.msra.mxu0 0
          %860 = vmatprep.subr.bf16.mxu0 0
          %861 = vmatpush1.bf16.msra.mxu0 0
          %862 = vmatprep.subr.bf16.mxu0 0
          %863 = vmatpush1.bf16.msra.mxu0 0
          %864 = vmatprep.subr.bf16.mxu0 0
          %865 = vmatpush1.bf16.msra.mxu0 0
          %866 = vmatprep.subr.bf16.mxu0 0
          %867 = vmatpush1.bf16.msra.mxu0 0
          %868 = vmatprep.subr.bf16.mxu0 0
          %869 = vmatpush1.bf16.msra.mxu0 0
          %870 = vmatprep.subr.bf16.mxu0 0
          %871 = vmatpush1.bf16.msra.mxu0 0
          %872 = vmatprep.subr.bf16.mxu0 0
          %873 = vmatpush1.bf16.msra.mxu0 0
          %874 = vmatprep.subr.bf16.mxu0 0
          %875 = vmatpush1.bf16.msra.mxu0 0
          %876 = vmatprep.subr.bf16.mxu0 0
          %877 = vmatpush1.bf16.msra.mxu0 0
          %878 = vmatprep.subr.bf16.mxu0 0
          %879 = vmatpush1.bf16.msra.mxu0 0
          %880 = vmatprep.subr.bf16.mxu0 0
          %881 = vmatpush1.bf16.msra.mxu0 0
          %882 = vmatprep.subr.bf16.mxu0 0
          %883 = vmatpush1.bf16.msra.mxu0 0
          %884 = vmatprep.subr.bf16.mxu0 0
          %885 = vmatpush1.bf16.msra.mxu0 0
          %886 = vmatprep.mubr.bf16.mxu0 0
          %887 = vmatmul.mubr.bf16.gmra.mrb[0].mxu0 %v793
          %v888 = vpop.f32.mrb[0].mxu0
          %v889 = vadd.f32 0.0, %v888
          %v890 = vpop.f32.mrb[0].mxu0
          %v891 = vpop.f32.mrb[0].mxu0
          %v892 = vpop.f32.mrb[0].mxu0
          %893 = vdwg.mxu0
          %v894 = vpack.c.bf16 %v889, %v889
          %895 = vst.msk [vmem:[#allocation3] sm:$0xf] %vm836, %v894
        $region144: #{tpu_custom_call.1} parent=79 // pred_fallthru
          _
        %v896 = vld [vmem:[%s625] sm:$0xff]
        %v897 = vld [vmem:[#allocation9] sm:$0x1]
        %v898 = vld [vmem:[#allocation10] sm:$0x1]
        %vm899 = vcmask 261120
        %v900 = vsel %vm899, %v896, 0.0
        %901 = vadd.xlane.f32.xlu0 %v900
        %v902 = vpop.xlane.xlu0 %901
        %v903 = vrcp.pop 32.0
        %v904 = vmul.f32 %v902, %v903
        %v905 = vsub.f32 %v896, %v904
        %v906 = vmul.f32 %v905, %v905
        %v907 = vsel %vm899, %v906, 0.0
        %908 = vadd.xlane.f32.xlu0 %v907
        %v909 = vpop.xlane.xlu0 %908
        %v910 = vmul.f32 %v909, %v903
        %v911 = vadd.f32 %v910, 1e-05
        %v912 = vrsqrt.pop %v911
        %v913 = vmul.f32 %v905, %v912
        %v915 = vlaneseq
        %v916 = vshrl.u32 %v915, 7
        %v917 = vsub.s32 0, %v916
        %v918 = vrot.slane %v897, %v917
        %v920 = vmul.f32 %v913, %v918
        %v922 = vlaneseq
        %v923 = vshrl.u32 %v922, 7
        %v924 = vsub.s32 0, %v923
        %v925 = vrot.slane %v898, %v924
        %v927 = vadd.f32 %v920, %v925
        %v928 = vpack.c.bf16 %v927, %v927
        %v929 = vld [vmem:[#allocation12] sm:$0xf]
        %v930 = vld [vmem:[#allocation12 + $0x4] sm:$0xf]
        %v931 = vld [vmem:[#allocation12 + $0x8] sm:$0xf]
        %v932 = vld [vmem:[#allocation12 + $0xc] sm:$0xf]
        %v937 = vunpack.c.l.b16 %v929
        %v938 = vunpack.c.l.b16 %v930
        %v939 = vunpack.c.l.b16 %v931
        %v940 = vunpack.c.l.b16 %v932
        %v941 = vpack.c.b16 %v938, %v937
        %v942 = vpack.c.b16 %v940, %v939
        %v946 = vsel %vm899, %v928, 0
        %948 = vmatprep.subr.bf16.mxu0 0
        %949 = vmatpush1.bf16.msra.mxu0 %v941
        %950 = vmatprep.subr.bf16.mxu0 0
        %951 = vmatpush1.bf16.msra.mxu0 %v942
        %952 = vmatprep.subr.bf16.mxu0 0
        %953 = vmatpush1.bf16.msra.mxu0 0
        %954 = vmatprep.subr.bf16.mxu0 0
        %955 = vmatpush1.bf16.msra.mxu0 0
        %956 = vmatprep.subr.bf16.mxu0 0
        %957 = vmatpush1.bf16.msra.mxu0 0
        %958 = vmatprep.subr.bf16.mxu0 0
        %959 = vmatpush1.bf16.msra.mxu0 0
        %960 = vmatprep.subr.bf16.mxu0 0
        %961 = vmatpush1.bf16.msra.mxu0 0
        %962 = vmatprep.subr.bf16.mxu0 0
        %963 = vmatpush1.bf16.msra.mxu0 0
        %964 = vmatprep.subr.bf16.mxu0 0
        %965 = vmatpush1.bf16.msra.mxu0 0
        %966 = vmatprep.subr.bf16.mxu0 0
        %967 = vmatpush1.bf16.msra.mxu0 0
        %968 = vmatprep.subr.bf16.mxu0 0
        %969 = vmatpush1.bf16.msra.mxu0 0
        %970 = vmatprep.subr.bf16.mxu0 0
        %971 = vmatpush1.bf16.msra.mxu0 0
        %972 = vmatprep.subr.bf16.mxu0 0
        %973 = vmatpush1.bf16.msra.mxu0 0
        %974 = vmatprep.subr.bf16.mxu0 0
        %975 = vmatpush1.bf16.msra.mxu0 0
        %976 = vmatprep.subr.bf16.mxu0 0
        %977 = vmatpush1.bf16.msra.mxu0 0
        %978 = vmatprep.subr.bf16.mxu0 0
        %979 = vmatpush1.bf16.msra.mxu0 0
        %980 = vmatprep.mubr.bf16.mxu0 0
        %981 = vmatmul.mubr.bf16.gmra.mrb[0].mxu0 %v946
        %v982 = vpop.f32.mrb[0].mxu0
        %v983 = vadd.f32 0.0, %v982
        %v984 = vpop.f32.mrb[0].mxu0
        %v985 = vpop.f32.mrb[0].mxu0
        %v986 = vpop.f32.mrb[0].mxu0
        %987 = vdwg.mxu0
        %v988 = vmul.f32 %v983, 0.35355338
        %v989 = vpack.c.bf16 %v988, %v988
        %v990 = vld [vmem:[#allocation2] sm:$0xf]
        %v991 = vld [vmem:[#allocation3] sm:$0xf]
        %vm992 = vcmask 64512
        %v994 = vsel %vm992, %v989, 0
        %v997 = vsel %vm992, %v990, 0
        %999 = vmatprep.subr.bf16.mxu0 0
        %1000 = vmatpush1.bf16.xpose.msra.mxu0 %v997
        %1001 = vmatprep.subr.bf16.mxu0 0
        %1002 = vmatpush1.bf16.xpose.msra.mxu0 0
        %1003 = vmatprep.subr.bf16.mxu0 0
        %1004 = vmatpush1.bf16.xpose.msra.mxu0 0
        %1005 = vmatprep.subr.bf16.mxu0 0
        %1006 = vmatpush1.bf16.xpose.msra.mxu0 0
        %1007 = vmatprep.subr.bf16.mxu0 0
        %1008 = vmatpush1.bf16.xpose.msra.mxu0 0
        %1009 = vmatprep.subr.bf16.mxu0 0
        %1010 = vmatpush1.bf16.xpose.msra.mxu0 0
        %1011 = vmatprep.subr.bf16.mxu0 0
        %1012 = vmatpush1.bf16.xpose.msra.mxu0 0
        %1013 = vmatprep.subr.bf16.mxu0 0
        %1014 = vmatpush1.bf16.xpose.msra.mxu0 0
        %1015 = vmatprep.subr.bf16.mxu0 0
        %1016 = vmatpush1.bf16.xpose.msra.mxu0 0
        %1017 = vmatprep.subr.bf16.mxu0 0
        %1018 = vmatpush1.bf16.xpose.msra.mxu0 0
        %1019 = vmatprep.subr.bf16.mxu0 0
        %1020 = vmatpush1.bf16.xpose.msra.mxu0 0
        %1021 = vmatprep.subr.bf16.mxu0 0
        %1022 = vmatpush1.bf16.xpose.msra.mxu0 0
        %1023 = vmatprep.subr.bf16.mxu0 0
        %1024 = vmatpush1.bf16.xpose.msra.mxu0 0
        %1025 = vmatprep.subr.bf16.mxu0 0
        %1026 = vmatpush1.bf16.xpose.msra.mxu0 0
        %1027 = vmatprep.subr.bf16.mxu0 0
        %1028 = vmatpush1.bf16.xpose.msra.mxu0 0
        %1029 = vmatprep.subr.bf16.mxu0 0
        %1030 = vmatpush1.bf16.xpose.msra.mxu0 0
        %1031 = vmatprep.mubr.bf16.mxu0 0
        %1032 = vmatmul.mubr.bf16.gmra.mrb[0].mxu0 %v994
        %v1033 = vpop.f32.mrb[0].mxu0
        %v1034 = vadd.f32 0.0, %v1033
        %v1035 = vpop.f32.mrb[0].mxu0
        %v1036 = vpop.f32.mrb[0].mxu0
        %v1037 = vpop.f32.mrb[0].mxu0
        %1038 = vdwg.mxu0
        %v1039 = vsel %vm992, %v1034, -inf
        %1040 = vmax.xlane.f32.xlu0 %v1039
        %v1041 = vpop.xlane.xlu0 %1040
        %v1042 = vsub.f32 %v1034, %v1041
        %v1043 = vmul.f32 %v1042, 1.442695
        %v1044 = vpow.pop %v1043
        %v1045 = vsel %vm992, %v1044, 0.0
        %1046 = vadd.xlane.f32.xlu0 %v1045
        %v1047 = vpop.xlane.xlu0 %1046
        %v1048 = vrcp.pop %v1047
        %v1049 = vmul.f32 %v1044, %v1048
        %v1050 = vpack.c.bf16 %v1049, %v1049
        %v1052 = vsel %vm992, %v1050, 0
        %vm1054 = vcmask 1043456
        %v1056 = vsel %vm1054, %v991, 0
        %1058 = vmatprep.subr.bf16.mxu0 0
        %1059 = vmatpush1.bf16.msra.mxu0 %v1056
        %1060 = vmatprep.subr.bf16.mxu0 0
        %1061 = vmatpush1.bf16.msra.mxu0 0
        %1062 = vmatprep.subr.bf16.mxu0 0
        %1063 = vmatpush1.bf16.msra.mxu0 0
        %1064 = vmatprep.subr.bf16.mxu0 0
        %1065 = vmatpush1.bf16.msra.mxu0 0
        %1066 = vmatprep.subr.bf16.mxu0 0
        %1067 = vmatpush1.bf16.msra.mxu0 0
        %1068 = vmatprep.subr.bf16.mxu0 0
        %1069 = vmatpush1.bf16.msra.mxu0 0
        %1070 = vmatprep.subr.bf16.mxu0 0
        %1071 = vmatpush1.bf16.msra.mxu0 0
        %1072 = vmatprep.subr.bf16.mxu0 0
        %1073 = vmatpush1.bf16.msra.mxu0 0
        %1074 = vmatprep.subr.bf16.mxu0 0
        %1075 = vmatpush1.bf16.msra.mxu0 0
        %1076 = vmatprep.subr.bf16.mxu0 0
        %1077 = vmatpush1.bf16.msra.mxu0 0
        %1078 = vmatprep.subr.bf16.mxu0 0
        %1079 = vmatpush1.bf16.msra.mxu0 0
        %1080 = vmatprep.subr.bf16.mxu0 0
        %1081 = vmatpush1.bf16.msra.mxu0 0
        %1082 = vmatprep.subr.bf16.mxu0 0
        %1083 = vmatpush1.bf16.msra.mxu0 0
        %1084 = vmatprep.subr.bf16.mxu0 0
        %1085 = vmatpush1.bf16.msra.mxu0 0
        %1086 = vmatprep.subr.bf16.mxu0 0
        %1087 = vmatpush1.bf16.msra.mxu0 0
        %1088 = vmatprep.subr.bf16.mxu0 0
        %1089 = vmatpush1.bf16.msra.mxu0 0
        %1090 = vmatprep.mubr.bf16.mxu0 0
        %1091 = vmatmul.mubr.bf16.gmra.mrb[0].mxu0 %v1052
        %v1092 = vpop.f32.mrb[0].mxu0
        %v1093 = vadd.f32 0.0, %v1092
        %v1094 = vpop.f32.mrb[0].mxu0
        %v1095 = vpop.f32.mrb[0].mxu0
        %v1096 = vpop.f32.mrb[0].mxu0
        %1097 = vdwg.mxu0
        %v1098 = vpack.c.bf16 %v1093, %v1093
        %v1099 = vld [vmem:[#allocation16] sm:$0xf]
        %1101 = vrot.lane.b32.xlu0 %v989, 120
        %v1102 = vpop.permute.xlu0 %1101
        %v1104 = vunpack.c.l.b16 %v990
        %v1105 = vpack.c.b16 %v1104, %v1104
        %1106 = vrot.lane.b32.xlu0 %v1105, 120
        %v1107 = vpop.permute.xlu0 %1106
        %v1109 = vsel %vm992, %v1102, 0
        %v1112 = vsel %vm992, %v1107, 0
        %1114 = vmatprep.subr.bf16.mxu0 0
        %1115 = vmatpush1.bf16.xpose.msra.mxu0 %v1112
        %1116 = vmatprep.subr.bf16.mxu0 0
        %1117 = vmatpush1.bf16.xpose.msra.mxu0 0
        %1118 = vmatprep.subr.bf16.mxu0 0
        %1119 = vmatpush1.bf16.xpose.msra.mxu0 0
        %1120 = vmatprep.subr.bf16.mxu0 0
        %1121 = vmatpush1.bf16.xpose.msra.mxu0 0
        %1122 = vmatprep.subr.bf16.mxu0 0
        %1123 = vmatpush1.bf16.xpose.msra.mxu0 0
        %1124 = vmatprep.subr.bf16.mxu0 0
        %1125 = vmatpush1.bf16.xpose.msra.mxu0 0
        %1126 = vmatprep.subr.bf16.mxu0 0
        %1127 = vmatpush1.bf16.xpose.msra.mxu0 0
        %1128 = vmatprep.subr.bf16.mxu0 0
        %1129 = vmatpush1.bf16.xpose.msra.mxu0 0
        %1130 = vmatprep.subr.bf16.mxu0 0
        %1131 = vmatpush1.bf16.xpose.msra.mxu0 0
        %1132 = vmatprep.subr.bf16.mxu0 0
        %1133 = vmatpush1.bf16.xpose.msra.mxu0 0
        %1134 = vmatprep.subr.bf16.mxu0 0
        %1135 = vmatpush1.bf16.xpose.msra.mxu0 0
        %1136 = vmatprep.subr.bf16.mxu0 0
        %1137 = vmatpush1.bf16.xpose.msra.mxu0 0
        %1138 = vmatprep.subr.bf16.mxu0 0
        %1139 = vmatpush1.bf16.xpose.msra.mxu0 0
        %1140 = vmatprep.subr.bf16.mxu0 0
        %1141 = vmatpush1.bf16.xpose.msra.mxu0 0
        %1142 = vmatprep.subr.bf16.mxu0 0
        %1143 = vmatpush1.bf16.xpose.msra.mxu0 0
        %1144 = vmatprep.subr.bf16.mxu0 0
        %1145 = vmatpush1.bf16.xpose.msra.mxu0 0
        %1146 = vmatprep.mubr.bf16.mxu0 0
        %1147 = vmatmul.mubr.bf16.gmra.mrb[0].mxu0 %v1109
        %v1148 = vpop.f32.mrb[0].mxu0
        %v1149 = vadd.f32 0.0, %v1148
        %v1150 = vpop.f32.mrb[0].mxu0
        %v1151 = vpop.f32.mrb[0].mxu0
        %v1152 = vpop.f32.mrb[0].mxu0
        %1153 = vdwg.mxu0
        %v1154 = vsel %vm992, %v1149, -inf
        %1155 = vmax.xlane.f32.xlu0 %v1154
        %v1156 = vpop.xlane.xlu0 %1155
        %v1157 = vsub.f32 %v1149, %v1156
        %v1158 = vmul.f32 %v1157, 1.442695
        %v1159 = vpow.pop %v1158
        %v1160 = vsel %vm992, %v1159, 0.0
        %1161 = vadd.xlane.f32.xlu0 %v1160
        %v1162 = vpop.xlane.xlu0 %1161
        %v1163 = vrcp.pop %v1162
        %v1164 = vmul.f32 %v1159, %v1163
        %v1165 = vpack.c.bf16 %v1164, %v1164
        %v1167 = vunpack.c.l.b16 %v991
        %v1168 = vpack.c.b16 %v1167, %v1167
        %1169 = vrot.lane.b32.xlu0 %v1168, 120
        %v1170 = vpop.permute.xlu0 %1169
        %v1172 = vsel %vm992, %v1165, 0
        %v1175 = vsel %vm1054, %v1170, 0
        %1177 = vmatprep.subr.bf16.mxu0 0
        %1178 = vmatpush1.bf16.msra.mxu0 %v1175
        %1179 = vmatprep.subr.bf16.mxu0 0
        %1180 = vmatpush1.bf16.msra.mxu0 0
        %1181 = vmatprep.subr.bf16.mxu0 0
        %1182 = vmatpush1.bf16.msra.mxu0 0
        %1183 = vmatprep.subr.bf16.mxu0 0
        %1184 = vmatpush1.bf16.msra.mxu0 0
        %1185 = vmatprep.subr.bf16.mxu0 0
        %1186 = vmatpush1.bf16.msra.mxu0 0
        %1187 = vmatprep.subr.bf16.mxu0 0
        %1188 = vmatpush1.bf16.msra.mxu0 0
        %1189 = vmatprep.subr.bf16.mxu0 0
        %1190 = vmatpush1.bf16.msra.mxu0 0
        %1191 = vmatprep.subr.bf16.mxu0 0
        %1192 = vmatpush1.bf16.msra.mxu0 0
        %1193 = vmatprep.subr.bf16.mxu0 0
        %1194 = vmatpush1.bf16.msra.mxu0 0
        %1195 = vmatprep.subr.bf16.mxu0 0
        %1196 = vmatpush1.bf16.msra.mxu0 0
        %1197 = vmatprep.subr.bf16.mxu0 0
        %1198 = vmatpush1.bf16.msra.mxu0 0
        %1199 = vmatprep.subr.bf16.mxu0 0
        %1200 = vmatpush1.bf16.msra.mxu0 0
        %1201 = vmatprep.subr.bf16.mxu0 0
        %1202 = vmatpush1.bf16.msra.mxu0 0
        %1203 = vmatprep.subr.bf16.mxu0 0
        %1204 = vmatpush1.bf16.msra.mxu0 0
        %1205 = vmatprep.subr.bf16.mxu0 0
        %1206 = vmatpush1.bf16.msra.mxu0 0
        %1207 = vmatprep.subr.bf16.mxu0 0
        %1208 = vmatpush1.bf16.msra.mxu0 0
        %1209 = vmatprep.mubr.bf16.mxu0 0
        %1210 = vmatmul.mubr.bf16.gmra.mrb[0].mxu0 %v1172
        %v1211 = vpop.f32.mrb[0].mxu0
        %v1212 = vadd.f32 0.0, %v1211
        %v1213 = vpop.f32.mrb[0].mxu0
        %v1214 = vpop.f32.mrb[0].mxu0
        %v1215 = vpop.f32.mrb[0].mxu0
        %1216 = vdwg.mxu0
        %v1217 = vpack.c.bf16 %v1212, %v1212
        %v1218 = vld [vmem:[#allocation16 + $0x4] sm:$0xf]
        %v1220 = vsel %vm992, %v1217, 0
        %v1223 = vsel %vm1054, %v1218, 0
        %1225 = vmatprep.subr.bf16.mxu0 0
        %1226 = vmatpush1.bf16.msra.mxu0 %v1223
        %1227 = vmatprep.subr.bf16.mxu0 0
        %1228 = vmatpush1.bf16.msra.mxu0 0
        %1229 = vmatprep.subr.bf16.mxu0 0
        %1230 = vmatpush1.bf16.msra.mxu0 0
        %1231 = vmatprep.subr.bf16.mxu0 0
        %1232 = vmatpush1.bf16.msra.mxu0 0
        %1233 = vmatprep.subr.bf16.mxu0 0
        %1234 = vmatpush1.bf16.msra.mxu0 0
        %1235 = vmatprep.subr.bf16.mxu0 0
        %1236 = vmatpush1.bf16.msra.mxu0 0
        %1237 = vmatprep.subr.bf16.mxu0 0
        %1238 = vmatpush1.bf16.msra.mxu0 0
        %1239 = vmatprep.subr.bf16.mxu0 0
        %1240 = vmatpush1.bf16.msra.mxu0 0
        %1241 = vmatprep.subr.bf16.mxu0 0
        %1242 = vmatpush1.bf16.msra.mxu0 0
        %1243 = vmatprep.subr.bf16.mxu0 0
        %1244 = vmatpush1.bf16.msra.mxu0 0
        %1245 = vmatprep.subr.bf16.mxu0 0
        %1246 = vmatpush1.bf16.msra.mxu0 0
        %1247 = vmatprep.subr.bf16.mxu0 0
        %1248 = vmatpush1.bf16.msra.mxu0 0
        %1249 = vmatprep.subr.bf16.mxu0 0
        %1250 = vmatpush1.bf16.msra.mxu0 0
        %1251 = vmatprep.subr.bf16.mxu0 0
        %1252 = vmatpush1.bf16.msra.mxu0 0
        %1253 = vmatprep.subr.bf16.mxu0 0
        %1254 = vmatpush1.bf16.msra.mxu0 0
        %1255 = vmatprep.subr.bf16.mxu0 0
        %1256 = vmatpush1.bf16.msra.mxu0 0
        %1257 = vmatprep.mubr.bf16.mxu0 0
        %1258 = vmatmul.mubr.bf16.gmra.mrb[0].mxu0 %v1220
        %v1259 = vpop.f32.mrb[0].mxu0
        %v1260 = vadd.f32 0.0, %v1259
        %v1261 = vpop.f32.mrb[0].mxu0
        %v1262 = vpop.f32.mrb[0].mxu0
        %v1263 = vpop.f32.mrb[0].mxu0
        %1264 = vdwg.mxu0
        %v1266 = vsel %vm992, %v1098, 0
        %v1269 = vsel %vm1054, %v1099, 0
        %1271 = vmatprep.subr.bf16.mxu0 0
        %1272 = vmatpush1.bf16.msra.mxu0 %v1269
        %1273 = vmatprep.subr.bf16.mxu0 0
        %1274 = vmatpush1.bf16.msra.mxu0 0
        %1275 = vmatprep.subr.bf16.mxu0 0
        %1276 = vmatpush1.bf16.msra.mxu0 0
        %1277 = vmatprep.subr.bf16.mxu0 0
        %1278 = vmatpush1.bf16.msra.mxu0 0
        %1279 = vmatprep.subr.bf16.mxu0 0
        %1280 = vmatpush1.bf16.msra.mxu0 0
        %1281 = vmatprep.subr.bf16.mxu0 0
        %1282 = vmatpush1.bf16.msra.mxu0 0
        %1283 = vmatprep.subr.bf16.mxu0 0
        %1284 = vmatpush1.bf16.msra.mxu0 0
        %1285 = vmatprep.subr.bf16.mxu0 0
        %1286 = vmatpush1.bf16.msra.mxu0 0
        %1287 = vmatprep.subr.bf16.mxu0 0
        %1288 = vmatpush1.bf16.msra.mxu0 0
        %1289 = vmatprep.subr.bf16.mxu0 0
        %1290 = vmatpush1.bf16.msra.mxu0 0
        %1291 = vmatprep.subr.bf16.mxu0 0
        %1292 = vmatpush1.bf16.msra.mxu0 0
        %1293 = vmatprep.subr.bf16.mxu0 0
        %1294 = vmatpush1.bf16.msra.mxu0 0
        %1295 = vmatprep.subr.bf16.mxu0 0
        %1296 = vmatpush1.bf16.msra.mxu0 0
        %1297 = vmatprep.subr.bf16.mxu0 0
        %1298 = vmatpush1.bf16.msra.mxu0 0
        %1299 = vmatprep.subr.bf16.mxu0 0
        %1300 = vmatpush1.bf16.msra.mxu0 0
        %1301 = vmatprep.subr.bf16.mxu0 0
        %1302 = vmatpush1.bf16.msra.mxu0 0
        %1303 = vmatprep.mubr.bf16.mxu0 0
        %1304 = vmatmul.mubr.bf16.gmra.mrb[0].mxu0 %v1266
        %v1305 = vpop.f32.mrb[0].mxu0
        %v1306 = vadd.f32 %v1260, %v1305
        %v1307 = vpop.f32.mrb[0].mxu0
        %v1308 = vpop.f32.mrb[0].mxu0
        %v1309 = vpop.f32.mrb[0].mxu0
        %1310 = vdwg.mxu0
        %1311 = vrot.lane.b32.xlu0 %v989, 112
        %v1312 = vpop.permute.xlu0 %1311
        %1313 = vrot.lane.b32.xlu0 %v1105, 112
        %v1314 = vpop.permute.xlu0 %1313
        %v1316 = vsel %vm992, %v1312, 0
        %v1319 = vsel %vm992, %v1314, 0
        %1321 = vmatprep.subr.bf16.mxu0 0
        %1322 = vmatpush1.bf16.xpose.msra.mxu0 %v1319
        %1323 = vmatprep.subr.bf16.mxu0 0
        %1324 = vmatpush1.bf16.xpose.msra.mxu0 0
        %1325 = vmatprep.subr.bf16.mxu0 0
        %1326 = vmatpush1.bf16.xpose.msra.mxu0 0
        %1327 = vmatprep.subr.bf16.mxu0 0
        %1328 = vmatpush1.bf16.xpose.msra.mxu0 0
        %1329 = vmatprep.subr.bf16.mxu0 0
        %1330 = vmatpush1.bf16.xpose.msra.mxu0 0
        %1331 = vmatprep.subr.bf16.mxu0 0
        %1332 = vmatpush1.bf16.xpose.msra.mxu0 0
        %1333 = vmatprep.subr.bf16.mxu0 0
        %1334 = vmatpush1.bf16.xpose.msra.mxu0 0
        %1335 = vmatprep.subr.bf16.mxu0 0
        %1336 = vmatpush1.bf16.xpose.msra.mxu0 0
        %1337 = vmatprep.subr.bf16.mxu0 0
        %1338 = vmatpush1.bf16.xpose.msra.mxu0 0
        %1339 = vmatprep.subr.bf16.mxu0 0
        %1340 = vmatpush1.bf16.xpose.msra.mxu0 0
        %1341 = vmatprep.subr.bf16.mxu0 0
        %1342 = vmatpush1.bf16.xpose.msra.mxu0 0
        %1343 = vmatprep.subr.bf16.mxu0 0
        %1344 = vmatpush1.bf16.xpose.msra.mxu0 0
        %1345 = vmatprep.subr.bf16.mxu0 0
        %1346 = vmatpush1.bf16.xpose.msra.mxu0 0
        %1347 = vmatprep.subr.bf16.mxu0 0
        %1348 = vmatpush1.bf16.xpose.msra.mxu0 0
        %1349 = vmatprep.subr.bf16.mxu0 0
        %1350 = vmatpush1.bf16.xpose.msra.mxu0 0
        %1351 = vmatprep.subr.bf16.mxu0 0
        %1352 = vmatpush1.bf16.xpose.msra.mxu0 0
        %1353 = vmatprep.mubr.bf16.mxu0 0
        %1354 = vmatmul.mubr.bf16.gmra.mrb[0].mxu0 %v1316
        %v1355 = vpop.f32.mrb[0].mxu0
        %v1356 = vadd.f32 0.0, %v1355
        %v1357 = vpop.f32.mrb[0].mxu0
        %v1358 = vpop.f32.mrb[0].mxu0
        %v1359 = vpop.f32.mrb[0].mxu0
        %1360 = vdwg.mxu0
        %v1361 = vsel %vm992, %v1356, -inf
        %1362 = vmax.xlane.f32.xlu0 %v1361
        %v1363 = vpop.xlane.xlu0 %1362
        %v1364 = vsub.f32 %v1356, %v1363
        %v1365 = vmul.f32 %v1364, 1.442695
        %v1366 = vpow.pop %v1365
        %v1367 = vsel %vm992, %v1366, 0.0
        %1368 = vadd.xlane.f32.xlu0 %v1367
        %v1369 = vpop.xlane.xlu0 %1368
        %v1370 = vrcp.pop %v1369
        %v1371 = vmul.f32 %v1366, %v1370
        %v1372 = vpack.c.bf16 %v1371, %v1371
        %1373 = vrot.lane.b32.xlu0 %v1168, 112
        %v1374 = vpop.permute.xlu0 %1373
        %v1376 = vsel %vm992, %v1372, 0
        %v1379 = vsel %vm1054, %v1374, 0
        %1381 = vmatprep.subr.bf16.mxu0 0
        %1382 = vmatpush1.bf16.msra.mxu0 %v1379
        %1383 = vmatprep.subr.bf16.mxu0 0
        %1384 = vmatpush1.bf16.msra.mxu0 0
        %1385 = vmatprep.subr.bf16.mxu0 0
        %1386 = vmatpush1.bf16.msra.mxu0 0
        %1387 = vmatprep.subr.bf16.mxu0 0
        %1388 = vmatpush1.bf16.msra.mxu0 0
        %1389 = vmatprep.subr.bf16.mxu0 0
        %1390 = vmatpush1.bf16.msra.mxu0 0
        %1391 = vmatprep.subr.bf16.mxu0 0
        %1392 = vmatpush1.bf16.msra.mxu0 0
        %1393 = vmatprep.subr.bf16.mxu0 0
        %1394 = vmatpush1.bf16.msra.mxu0 0
        %1395 = vmatprep.subr.bf16.mxu0 0
        %1396 = vmatpush1.bf16.msra.mxu0 0
        %1397 = vmatprep.subr.bf16.mxu0 0
        %1398 = vmatpush1.bf16.msra.mxu0 0
        %1399 = vmatprep.subr.bf16.mxu0 0
        %1400 = vmatpush1.bf16.msra.mxu0 0
        %1401 = vmatprep.subr.bf16.mxu0 0
        %1402 = vmatpush1.bf16.msra.mxu0 0
        %1403 = vmatprep.subr.bf16.mxu0 0
        %1404 = vmatpush1.bf16.msra.mxu0 0
        %1405 = vmatprep.subr.bf16.mxu0 0
        %1406 = vmatpush1.bf16.msra.mxu0 0
        %1407 = vmatprep.subr.bf16.mxu0 0
        %1408 = vmatpush1.bf16.msra.mxu0 0
        %1409 = vmatprep.subr.bf16.mxu0 0
        %1410 = vmatpush1.bf16.msra.mxu0 0
        %1411 = vmatprep.subr.bf16.mxu0 0
        %1412 = vmatpush1.bf16.msra.mxu0 0
        %1413 = vmatprep.mubr.bf16.mxu0 0
        %1414 = vmatmul.mubr.bf16.gmra.mrb[0].mxu0 %v1376
        %v1415 = vpop.f32.mrb[0].mxu0
        %v1416 = vadd.f32 0.0, %v1415
        %v1417 = vpop.f32.mrb[0].mxu0
        %v1418 = vpop.f32.mrb[0].mxu0
        %v1419 = vpop.f32.mrb[0].mxu0
        %1420 = vdwg.mxu0
        %v1421 = vpack.c.bf16 %v1416, %v1416
        %v1422 = vld [vmem:[#allocation16 + $0x8] sm:$0xf]
        %v1424 = vsel %vm992, %v1421, 0
        %v1427 = vsel %vm1054, %v1422, 0
        %1429 = vmatprep.subr.bf16.mxu0 0
        %1430 = vmatpush1.bf16.msra.mxu0 %v1427
        %1431 = vmatprep.subr.bf16.mxu0 0
        %1432 = vmatpush1.bf16.msra.mxu0 0
        %1433 = vmatprep.subr.bf16.mxu0 0
        %1434 = vmatpush1.bf16.msra.mxu0 0
        %1435 = vmatprep.subr.bf16.mxu0 0
        %1436 = vmatpush1.bf16.msra.mxu0 0
        %1437 = vmatprep.subr.bf16.mxu0 0
        %1438 = vmatpush1.bf16.msra.mxu0 0
        %1439 = vmatprep.subr.bf16.mxu0 0
        %1440 = vmatpush1.bf16.msra.mxu0 0
        %1441 = vmatprep.subr.bf16.mxu0 0
        %1442 = vmatpush1.bf16.msra.mxu0 0
        %1443 = vmatprep.subr.bf16.mxu0 0
        %1444 = vmatpush1.bf16.msra.mxu0 0
        %1445 = vmatprep.subr.bf16.mxu0 0
        %1446 = vmatpush1.bf16.msra.mxu0 0
        %1447 = vmatprep.subr.bf16.mxu0 0
        %1448 = vmatpush1.bf16.msra.mxu0 0
        %1449 = vmatprep.subr.bf16.mxu0 0
        %1450 = vmatpush1.bf16.msra.mxu0 0
        %1451 = vmatprep.subr.bf16.mxu0 0
        %1452 = vmatpush1.bf16.msra.mxu0 0
        %1453 = vmatprep.subr.bf16.mxu0 0
        %1454 = vmatpush1.bf16.msra.mxu0 0
        %1455 = vmatprep.subr.bf16.mxu0 0
        %1456 = vmatpush1.bf16.msra.mxu0 0
        %1457 = vmatprep.subr.bf16.mxu0 0
        %1458 = vmatpush1.bf16.msra.mxu0 0
        %1459 = vmatprep.subr.bf16.mxu0 0
        %1460 = vmatpush1.bf16.msra.mxu0 0
        %1461 = vmatprep.mubr.bf16.mxu0 0
        %1462 = vmatmul.mubr.bf16.gmra.mrb[0].mxu0 %v1424
        %v1463 = vpop.f32.mrb[0].mxu0
        %v1464 = vadd.f32 0.0, %v1463
        %v1465 = vpop.f32.mrb[0].mxu0
        %v1466 = vpop.f32.mrb[0].mxu0
        %v1467 = vpop.f32.mrb[0].mxu0
        %1468 = vdwg.mxu0
        %v1469 = vadd.f32 %v1306, %v1464
        %1470 = vrot.lane.b32.xlu0 %v989, 104
        %v1471 = vpop.permute.xlu0 %1470
        %1472 = vrot.lane.b32.xlu0 %v1105, 104
        %v1473 = vpop.permute.xlu0 %1472
        %v1475 = vsel %vm992, %v1471, 0
        %v1478 = vsel %vm992, %v1473, 0
        %1480 = vmatprep.subr.bf16.mxu0 0
        %1481 = vmatpush1.bf16.xpose.msra.mxu0 %v1478
        %1482 = vmatprep.subr.bf16.mxu0 0
        %1483 = vmatpush1.bf16.xpose.msra.mxu0 0
        %1484 = vmatprep.subr.bf16.mxu0 0
        %1485 = vmatpush1.bf16.xpose.msra.mxu0 0
        %1486 = vmatprep.subr.bf16.mxu0 0
        %1487 = vmatpush1.bf16.xpose.msra.mxu0 0
        %1488 = vmatprep.subr.bf16.mxu0 0
        %1489 = vmatpush1.bf16.xpose.msra.mxu0 0
        %1490 = vmatprep.subr.bf16.mxu0 0
        %1491 = vmatpush1.bf16.xpose.msra.mxu0 0
        %1492 = vmatprep.subr.bf16.mxu0 0
        %1493 = vmatpush1.bf16.xpose.msra.mxu0 0
        %1494 = vmatprep.subr.bf16.mxu0 0
        %1495 = vmatpush1.bf16.xpose.msra.mxu0 0
        %1496 = vmatprep.subr.bf16.mxu0 0
        %1497 = vmatpush1.bf16.xpose.msra.mxu0 0
        %1498 = vmatprep.subr.bf16.mxu0 0
        %1499 = vmatpush1.bf16.xpose.msra.mxu0 0
        %1500 = vmatprep.subr.bf16.mxu0 0
        %1501 = vmatpush1.bf16.xpose.msra.mxu0 0
        %1502 = vmatprep.subr.bf16.mxu0 0
        %1503 = vmatpush1.bf16.xpose.msra.mxu0 0
        %1504 = vmatprep.subr.bf16.mxu0 0
        %1505 = vmatpush1.bf16.xpose.msra.mxu0 0
        %1506 = vmatprep.subr.bf16.mxu0 0
        %1507 = vmatpush1.bf16.xpose.msra.mxu0 0
        %1508 = vmatprep.subr.bf16.mxu0 0
        %1509 = vmatpush1.bf16.xpose.msra.mxu0 0
        %1510 = vmatprep.subr.bf16.mxu0 0
        %1511 = vmatpush1.bf16.xpose.msra.mxu0 0
        %1512 = vmatprep.mubr.bf16.mxu0 0
        %1513 = vmatmul.mubr.bf16.gmra.mrb[0].mxu0 %v1475
        %v1514 = vpop.f32.mrb[0].mxu0
        %v1515 = vadd.f32 0.0, %v1514
        %v1516 = vpop.f32.mrb[0].mxu0
        %v1517 = vpop.f32.mrb[0].mxu0
        %v1518 = vpop.f32.mrb[0].mxu0
        %1519 = vdwg.mxu0
        %v1520 = vsel %vm992, %v1515, -inf
        %1521 = vmax.xlane.f32.xlu0 %v1520
        %v1522 = vpop.xlane.xlu0 %1521
        %v1523 = vsub.f32 %v1515, %v1522
        %v1524 = vmul.f32 %v1523, 1.442695
        %v1525 = vpow.pop %v1524
        %v1526 = vsel %vm992, %v1525, 0.0
        %1527 = vadd.xlane.f32.xlu0 %v1526
        %v1528 = vpop.xlane.xlu0 %1527
        %v1529 = vrcp.pop %v1528
        %v1530 = vmul.f32 %v1525, %v1529
        %v1531 = vpack.c.bf16 %v1530, %v1530
        %1532 = vrot.lane.b32.xlu0 %v1168, 104
        %v1533 = vpop.permute.xlu0 %1532
        %v1535 = vsel %vm992, %v1531, 0
        %v1538 = vsel %vm1054, %v1533, 0
        %1540 = vmatprep.subr.bf16.mxu0 0
        %1541 = vmatpush1.bf16.msra.mxu0 %v1538
        %1542 = vmatprep.subr.bf16.mxu0 0
        %1543 = vmatpush1.bf16.msra.mxu0 0
        %1544 = vmatprep.subr.bf16.mxu0 0
        %1545 = vmatpush1.bf16.msra.mxu0 0
        %1546 = vmatprep.subr.bf16.mxu0 0
        %1547 = vmatpush1.bf16.msra.mxu0 0
        %1548 = vmatprep.subr.bf16.mxu0 0
        %1549 = vmatpush1.bf16.msra.mxu0 0
        %1550 = vmatprep.subr.bf16.mxu0 0
        %1551 = vmatpush1.bf16.msra.mxu0 0
        %1552 = vmatprep.subr.bf16.mxu0 0
        %1553 = vmatpush1.bf16.msra.mxu0 0
        %1554 = vmatprep.subr.bf16.mxu0 0
        %1555 = vmatpush1.bf16.msra.mxu0 0
        %1556 = vmatprep.subr.bf16.mxu0 0
        %1557 = vmatpush1.bf16.msra.mxu0 0
        %1558 = vmatprep.subr.bf16.mxu0 0
        %1559 = vmatpush1.bf16.msra.mxu0 0
        %1560 = vmatprep.subr.bf16.mxu0 0
        %1561 = vmatpush1.bf16.msra.mxu0 0
        %1562 = vmatprep.subr.bf16.mxu0 0
        %1563 = vmatpush1.bf16.msra.mxu0 0
        %1564 = vmatprep.subr.bf16.mxu0 0
        %1565 = vmatpush1.bf16.msra.mxu0 0
        %1566 = vmatprep.subr.bf16.mxu0 0
        %1567 = vmatpush1.bf16.msra.mxu0 0
        %1568 = vmatprep.subr.bf16.mxu0 0
        %1569 = vmatpush1.bf16.msra.mxu0 0
        %1570 = vmatprep.subr.bf16.mxu0 0
        %1571 = vmatpush1.bf16.msra.mxu0 0
        %1572 = vmatprep.mubr.bf16.mxu0 0
        %1573 = vmatmul.mubr.bf16.gmra.mrb[0].mxu0 %v1535
        %v1574 = vpop.f32.mrb[0].mxu0
        %v1575 = vadd.f32 0.0, %v1574
        %v1576 = vpop.f32.mrb[0].mxu0
        %v1577 = vpop.f32.mrb[0].mxu0
        %v1578 = vpop.f32.mrb[0].mxu0
        %1579 = vdwg.mxu0
        %v1580 = vpack.c.bf16 %v1575, %v1575
        %v1581 = vld [vmem:[#allocation16 + $0xc] sm:$0xf]
        %v1583 = vsel %vm992, %v1580, 0
        %v1586 = vsel %vm1054, %v1581, 0
        %1588 = vmatprep.subr.bf16.mxu0 0
        %1589 = vmatpush1.bf16.msra.mxu0 %v1586
        %1590 = vmatprep.subr.bf16.mxu0 0
        %1591 = vmatpush1.bf16.msra.mxu0 0
        %1592 = vmatprep.subr.bf16.mxu0 0
        %1593 = vmatpush1.bf16.msra.mxu0 0
        %1594 = vmatprep.subr.bf16.mxu0 0
        %1595 = vmatpush1.bf16.msra.mxu0 0
        %1596 = vmatprep.subr.bf16.mxu0 0
        %1597 = vmatpush1.bf16.msra.mxu0 0
        %1598 = vmatprep.subr.bf16.mxu0 0
        %1599 = vmatpush1.bf16.msra.mxu0 0
        %1600 = vmatprep.subr.bf16.mxu0 0
        %1601 = vmatpush1.bf16.msra.mxu0 0
        %1602 = vmatprep.subr.bf16.mxu0 0
        %1603 = vmatpush1.bf16.msra.mxu0 0
        %1604 = vmatprep.subr.bf16.mxu0 0
        %1605 = vmatpush1.bf16.msra.mxu0 0
        %1606 = vmatprep.subr.bf16.mxu0 0
        %1607 = vmatpush1.bf16.msra.mxu0 0
        %1608 = vmatprep.subr.bf16.mxu0 0
        %1609 = vmatpush1.bf16.msra.mxu0 0
        %1610 = vmatprep.subr.bf16.mxu0 0
        %1611 = vmatpush1.bf16.msra.mxu0 0
        %1612 = vmatprep.subr.bf16.mxu0 0
        %1613 = vmatpush1.bf16.msra.mxu0 0
        %1614 = vmatprep.subr.bf16.mxu0 0
        %1615 = vmatpush1.bf16.msra.mxu0 0
        %1616 = vmatprep.subr.bf16.mxu0 0
        %1617 = vmatpush1.bf16.msra.mxu0 0
        %1618 = vmatprep.subr.bf16.mxu0 0
        %1619 = vmatpush1.bf16.msra.mxu0 0
        %1620 = vmatprep.mubr.bf16.mxu0 0
        %1621 = vmatmul.mubr.bf16.gmra.mrb[0].mxu0 %v1583
        %v1622 = vpop.f32.mrb[0].mxu0
        %v1623 = vadd.f32 0.0, %v1622
        %v1624 = vpop.f32.mrb[0].mxu0
        %v1625 = vpop.f32.mrb[0].mxu0
        %v1626 = vpop.f32.mrb[0].mxu0
        %1627 = vdwg.mxu0
        %v1628 = vadd.f32 %v1469, %v1623
        %v1629 = vadd.f32 %v896, %v1628
        %v1630 = vld [vmem:[#allocation18] sm:$0x1]
        %v1632 = vlaneseq
        %v1633 = vshrl.u32 %v1632, 7
        %v1634 = vsub.s32 0, %v1633
        %v1635 = vrot.slane %v1630, %v1634
        %v1637 = vadd.f32 %v1629, %v1635
        %v1638 = vld [vmem:[#allocation19] sm:$0x1]
        %v1639 = vld [vmem:[#allocation21] sm:$0x1]
        %v1640 = vsel %vm899, %v1637, 0.0
        %1641 = vadd.xlane.f32.xlu0 %v1640
        %v1642 = vpop.xlane.xlu0 %1641
        %v1643 = vmul.f32 %v1642, %v903
        %v1644 = vsub.f32 %v1637, %v1643
        %v1645 = vmul.f32 %v1644, %v1644
        %v1646 = vsel %vm899, %v1645, 0.0
        %1647 = vadd.xlane.f32.xlu0 %v1646
        %v1648 = vpop.xlane.xlu0 %1647
        %v1649 = vmul.f32 %v1648, %v903
        %v1650 = vadd.f32 %v1649, 1e-05
        %v1651 = vrsqrt.pop %v1650
        %v1652 = vmul.f32 %v1644, %v1651
        %v1654 = vlaneseq
        %v1655 = vshrl.u32 %v1654, 7
        %v1656 = vsub.s32 0, %v1655
        %v1657 = vrot.slane %v1638, %v1656
        %v1659 = vmul.f32 %v1652, %v1657
        %v1661 = vlaneseq
        %v1662 = vshrl.u32 %v1661, 7
        %v1663 = vsub.s32 0, %v1662
        %v1664 = vrot.slane %v1639, %v1663
        %v1666 = vadd.f32 %v1659, %v1664
        %v1667 = vpack.c.bf16 %v1666, %v1666
        %v1668 = vld [vmem:[#allocation22] sm:$0xf]
        %v1669 = vld [vmem:[#allocation22 + $0x4] sm:$0xf]
        %v1670 = vld [vmem:[#allocation22 + $0x8] sm:$0xf]
        %v1671 = vld [vmem:[#allocation22 + $0xc] sm:$0xf]
        %v1672 = vld [vmem:[#allocation24] sm:$0x1]
        %v1674 = vlaneseq
        %v1675 = vshrl.u32 %v1674, 7
        %v1676 = vsub.s32 0, %v1675
        %v1677 = vrot.slane %v1672, %v1676
        %v1683 = vunpack.c.l.b16 %v1668
        %v1684 = vunpack.c.l.b16 %v1669
        %v1685 = vunpack.c.l.b16 %v1670
        %v1686 = vunpack.c.l.b16 %v1671
        %v1687 = vpack.c.b16 %v1684, %v1683
        %v1688 = vpack.c.b16 %v1686, %v1685
        %v1692 = vsel %vm899, %v1667, 0
        %1694 = vmatprep.subr.bf16.mxu0 0
        %1695 = vmatpush1.bf16.msra.mxu0 %v1687
        %1696 = vmatprep.subr.bf16.mxu0 0
        %1697 = vmatpush1.bf16.msra.mxu0 %v1688
        %1698 = vmatprep.subr.bf16.mxu0 0
        %1699 = vmatpush1.bf16.msra.mxu0 0
        %1700 = vmatprep.subr.bf16.mxu0 0
        %1701 = vmatpush1.bf16.msra.mxu0 0
        %1702 = vmatprep.subr.bf16.mxu0 0
        %1703 = vmatpush1.bf16.msra.mxu0 0
        %1704 = vmatprep.subr.bf16.mxu0 0
        %1705 = vmatpush1.bf16.msra.mxu0 0
        %1706 = vmatprep.subr.bf16.mxu0 0
        %1707 = vmatpush1.bf16.msra.mxu0 0
        %1708 = vmatprep.subr.bf16.mxu0 0
        %1709 = vmatpush1.bf16.msra.mxu0 0
        %1710 = vmatprep.subr.bf16.mxu0 0
        %1711 = vmatpush1.bf16.msra.mxu0 0
        %1712 = vmatprep.subr.bf16.mxu0 0
        %1713 = vmatpush1.bf16.msra.mxu0 0
        %1714 = vmatprep.subr.bf16.mxu0 0
        %1715 = vmatpush1.bf16.msra.mxu0 0
        %1716 = vmatprep.subr.bf16.mxu0 0
        %1717 = vmatpush1.bf16.msra.mxu0 0
        %1718 = vmatprep.subr.bf16.mxu0 0
        %1719 = vmatpush1.bf16.msra.mxu0 0
        %1720 = vmatprep.subr.bf16.mxu0 0
        %1721 = vmatpush1.bf16.msra.mxu0 0
        %1722 = vmatprep.subr.bf16.mxu0 0
        %1723 = vmatpush1.bf16.msra.mxu0 0
        %1724 = vmatprep.subr.bf16.mxu0 0
        %1725 = vmatpush1.bf16.msra.mxu0 0
        %1726 = vmatprep.mubr.bf16.mxu0 0
        %1727 = vmatmul.mubr.bf16.gmra.mrb[0].mxu0 %v1692
        %v1728 = vpop.f32.mrb[0].mxu0
        %v1729 = vadd.f32 %v1677, %v1728
        %v1730 = vpop.f32.mrb[0].mxu0
        %v1731 = vpop.f32.mrb[0].mxu0
        %v1732 = vpop.f32.mrb[0].mxu0
        %1733 = vdwg.mxu0
        %v1734 = vmul.f32 %v1729, 0.5
        %v1735 = vmul.f32 %v1729, 0.70710677
        %v1736 = verf.f32.pop %v1735
        %v1737 = vadd.f32 %v1736, 1.0
        %v1738 = vmul.f32 %v1734, %v1737
        %v1739 = vpack.c.bf16 %v1738, %v1738
        %v1740 = vld [vmem:[#allocation25] sm:$0xf]
        %v1741 = vld [vmem:[#allocation25 + $0x4] sm:$0xf]
        %v1742 = vld [vmem:[#allocation25 + $0x8] sm:$0xf]
        %v1743 = vld [vmem:[#allocation25 + $0xc] sm:$0xf]
        %v1744 = vld [vmem:[#allocation25 + $0x10] sm:$0xf]
        %v1745 = vld [vmem:[#allocation25 + $0x14] sm:$0xf]
        %v1746 = vld [vmem:[#allocation25 + $0x18] sm:$0xf]
        %v1747 = vld [vmem:[#allocation25 + $0x1c] sm:$0xf]
        %v1748 = vld [vmem:[#allocation25 + $0x20] sm:$0xf]
        %v1749 = vld [vmem:[#allocation25 + $0x24] sm:$0xf]
        %v1750 = vld [vmem:[#allocation25 + $0x28] sm:$0xf]
        %v1751 = vld [vmem:[#allocation25 + $0x2c] sm:$0xf]
        %v1752 = vld [vmem:[#allocation25 + $0x30] sm:$0xf]
        %v1753 = vld [vmem:[#allocation25 + $0x34] sm:$0xf]
        %v1754 = vld [vmem:[#allocation25 + $0x38] sm:$0xf]
        %v1755 = vld [vmem:[#allocation25 + $0x3c] sm:$0xf]
        %v1756 = vld [vmem:[#allocation27] sm:$0x1]
        %v1758 = vlaneseq
        %v1759 = vshrl.u32 %v1758, 7
        %v1760 = vsub.s32 0, %v1759
        %v1761 = vrot.slane %v1756, %v1760
        %v1779 = vunpack.c.l.b16 %v1740
        %v1780 = vunpack.c.l.b16 %v1741
        %v1781 = vunpack.c.l.b16 %v1742
        %v1782 = vunpack.c.l.b16 %v1743
        %v1783 = vunpack.c.l.b16 %v1744
        %v1784 = vunpack.c.l.b16 %v1745
        %v1785 = vunpack.c.l.b16 %v1746
        %v1786 = vunpack.c.l.b16 %v1747
        %v1787 = vunpack.c.l.b16 %v1748
        %v1788 = vunpack.c.l.b16 %v1749
        %v1789 = vunpack.c.l.b16 %v1750
        %v1790 = vunpack.c.l.b16 %v1751
        %v1791 = vunpack.c.l.b16 %v1752
        %v1792 = vunpack.c.l.b16 %v1753
        %v1793 = vunpack.c.l.b16 %v1754
        %v1794 = vunpack.c.l.b16 %v1755
        %v1795 = vpack.c.b16 %v1780, %v1779
        %v1796 = vpack.c.b16 %v1782, %v1781
        %v1797 = vpack.c.b16 %v1784, %v1783
        %v1798 = vpack.c.b16 %v1786, %v1785
        %v1799 = vpack.c.b16 %v1788, %v1787
        %v1800 = vpack.c.b16 %v1790, %v1789
        %v1801 = vpack.c.b16 %v1792, %v1791
        %v1802 = vpack.c.b16 %v1794, %v1793
        %1811 = vmatprep.subr.bf16.mxu0 0
        %1812 = vmatpush1.bf16.msra.mxu0 %v1795
        %1813 = vmatprep.subr.bf16.mxu0 0
        %1814 = vmatpush1.bf16.msra.mxu0 %v1796
        %1815 = vmatprep.subr.bf16.mxu0 0
        %1816 = vmatpush1.bf16.msra.mxu0 %v1797
        %1817 = vmatprep.subr.bf16.mxu0 0
        %1818 = vmatpush1.bf16.msra.mxu0 %v1798
        %1819 = vmatprep.subr.bf16.mxu0 0
        %1820 = vmatpush1.bf16.msra.mxu0 %v1799
        %1821 = vmatprep.subr.bf16.mxu0 0
        %1822 = vmatpush1.bf16.msra.mxu0 %v1800
        %1823 = vmatprep.subr.bf16.mxu0 0
        %1824 = vmatpush1.bf16.msra.mxu0 %v1801
        %1825 = vmatprep.subr.bf16.mxu0 0
        %1826 = vmatpush1.bf16.msra.mxu0 %v1802
        %1827 = vmatprep.subr.bf16.mxu0 0
        %1828 = vmatpush1.bf16.msra.mxu0 0
        %1829 = vmatprep.subr.bf16.mxu0 0
        %1830 = vmatpush1.bf16.msra.mxu0 0
        %1831 = vmatprep.subr.bf16.mxu0 0
        %1832 = vmatpush1.bf16.msra.mxu0 0
        %1833 = vmatprep.subr.bf16.mxu0 0
        %1834 = vmatpush1.bf16.msra.mxu0 0
        %1835 = vmatprep.subr.bf16.mxu0 0
        %1836 = vmatpush1.bf16.msra.mxu0 0
        %1837 = vmatprep.subr.bf16.mxu0 0
        %1838 = vmatpush1.bf16.msra.mxu0 0
        %1839 = vmatprep.subr.bf16.mxu0 0
        %1840 = vmatpush1.bf16.msra.mxu0 0
        %1841 = vmatprep.subr.bf16.mxu0 0
        %1842 = vmatpush1.bf16.msra.mxu0 0
        %1843 = vmatprep.mubr.bf16.mxu0 0
        %1844 = vmatmul.mubr.bf16.gmra.mrb[0].mxu0 %v1739
        %v1845 = vpop.f32.mrb[0].mxu0
        %v1846 = vadd.f32 %v1761, %v1845
        %v1847 = vpop.f32.mrb[0].mxu0
        %v1848 = vpop.f32.mrb[0].mxu0
        %v1849 = vpop.f32.mrb[0].mxu0
        %1850 = vdwg.mxu0
        %v1851 = vadd.f32 %v1637, %v1846
        %1852 = vst.msk [vmem:[%s737] sm:$0xff] %vm899, %v1851
        %s1853 = sand.u32 %s390, 1
        %s1854 = scalar_lea.sflag [#allocation6], %s1853
        %s1855 = sand.u32 %s390, 1
        %s1856 = smul.addr %s1855, 8
        %s1857 = scalar_lea.vmem [#allocation28], %s1856
        // Predicated region
        $region145: #{tpu_custom_call.1} parent=79 // pred_check
          %p1858 = pneg %p400
        $region146: #{tpu_custom_call.1} parent=79 // pred_check_branch
          %1860 = sbr.rel (%p1858) target = $region148
        $region147: #{tpu_custom_call.1} parent=79 // pred_region
          %s1862 = ssub.s32 128, 128
          %1863 = vsyncadd %s1854, %s1862
          %s1864 = sadd.s32 %s46, %s45
          %s1865 = smul.addr %s1864, 128
          %s1866 = scalar_lea.hbm %s15, %s1865
          %s1868 = sshll.u32 %s1857, 4
          %s1869 = int_to_ptr.vmem [resolvable:$true] %s1868
          %1871 = dma.vmem_to_hbm [thread:$0]  %s1869, 128, %s1866, %s1854
        $region148: #{tpu_custom_call.1} parent=79 // pred_fallthru
          _
      $region80: #{tpu_custom_call.1} parent=5 // pred_fallthru
        _
      %p1872 = scmp.le.s32.totalorder 2, %s36
      // Predicated region
      $region149: #{tpu_custom_call.1} parent=5 // pred_check
        %p1873 = pneg %p1872
      $region150: #{tpu_custom_call.1} parent=5 // pred_check_branch
        %1875 = sbr.rel (%p1873) target = $region152
      $region151: #{tpu_custom_call.1} parent=5 // pred_region
        %s1876 = ssub.s32 %s36, 2
        // Predicated region
        $region153: #{tpu_custom_call.1} parent=151 // pred_check
          %p1877 = pneg %p406
        $region154: #{tpu_custom_call.1} parent=151 // pred_check_branch
          %1879 = sbr.rel (%p1877) target = $region156
        $region155: #{tpu_custom_call.1} parent=151 // pred_region
          %s1880 = sand.u32 %s391, 1
          %s1881 = scalar_lea.sflag [#allocation6], %s1880
          %s1882 = sand.u32 %s391, 1
          %s1883 = smul.addr %s1882, 8
          %s1884 = scalar_lea.vmem [#allocation28], %s1883
          %1885 = dma.done %s1881, 128
        $region156: #{tpu_custom_call.1} parent=151 // pred_fallthru
          _
      $region152: #{tpu_custom_call.1} parent=5 // pred_fallthru
        _
    $region6: #{tpu_custom_call.1} parent=1 // loop_footer
      %s40 = sadd.s32 1, %s36
    $region7: #{tpu_custom_call.1} parent=1 // loop_footer_branch
      %35 = sbr.rel target = $region3
    $region8: #{tpu_custom_call.1} parent=1 // loop_exit
      _
    %1886 = vsyncpa [#allocation5], 1
    %s1887 = scalar_lea.sflag [#allocation5], 1
    %1888 = vsyncpa %s1887, 1
    %1889 = vsyncpa [#allocation8], 1
    %s1890 = scalar_lea.sflag [#allocation8], 1
    %1891 = vsyncpa %s1890, 1
    %1892 = vsyncpa [#allocation11], 1
    %1893 = vsyncpa [#allocation14], 1
    %1894 = vsyncpa [#allocation17], 1
    %1895 = vsyncpa [#allocation20], 1
    %1896 = vsyncpa [#allocation23], 1
    %1897 = vsyncpa [#allocation26], 1
    %1898 = vsyncpa [#allocation6], 1
    %s1899 = scalar_lea.sflag [#allocation6], 1
    %1900 = vsyncpa %s1899, 1

</llo_original>
